<compile_context>
chip_gen: v7x
topology: tpu7x:2x2x1
jax: 0.10.0
libtpu: 0.0.40
codegen_flags: <defaults>
</compile_context>

<pallas_src>
import functools
import math

import jax
import jax.numpy as jnp
from jax.experimental import pallas as pl
from jax.experimental.pallas import tpu as pltpu


# ------------------------------ kernels ------------------------------

def _kv_projection_kernel(x_ref, wk_ref, bk_ref, wv_ref, bv_ref, kT_ref, v_ref,
                          *, num_heads):
    """Per-batch K/V projection, head-split via weight packing, K stored transposed."""
    x = x_ref[0]                                                       # (S, H) bf16
    for h in range(num_heads):
        k = jnp.dot(x, wk_ref[h], preferred_element_type=jnp.float32) + bk_ref[h]   # (S, hd) f32
        kT_ref[0, h] = k.T.astype(jnp.bfloat16)                        # (hd, S) lane-dense
        v = jnp.dot(x, wv_ref[h], preferred_element_type=jnp.float32) + bv_ref[h]   # (S, hd) f32
        v_ref[0, h] = v.astype(jnp.bfloat16)


def _attention_kernel(xq_ref, kT_ref, v_ref, mask_ref, wq_ref, bq_ref, out_ref,
                      *, num_heads):
    """One (batch, query-tile) step: Q projection + softmax(QK^T + mask) V."""
    xq = xq_ref[0]                                                     # (tq, H) bf16
    mask = mask_ref[0]                                                 # (1, S)  f32 additive

    ctx_heads = []
    for h in range(num_heads):
        # Q projection for this head; 1/sqrt(head_dim) is already folded into Wq/bq.
        q = jnp.dot(xq, wq_ref[h], preferred_element_type=jnp.float32)              # (tq, hd)
        q = (q + bq_ref[h]).astype(jnp.bfloat16)
        # Scores: straight MXU matmul against the lane-dense per-head K^T.
        s = jnp.dot(q, kT_ref[0, h], preferred_element_type=jnp.float32)            # (tq, S)
        s = s + mask
        s = s - jnp.max(s, axis=-1, keepdims=True)
        p = jnp.exp(s)
        p = p * pl.reciprocal(jnp.sum(p, axis=-1, keepdims=True), approx=True)       # softmax (dropout = id)
        ctx_heads.append(
            jnp.dot(p.astype(jnp.bfloat16), v_ref[0, h],
                    preferred_element_type=jnp.float32))                              # (tq, hd)

    # Merge heads once into a lane-dense block and issue a single dense store.
    out_ref[0] = jnp.concatenate(ctx_heads, axis=-1).astype(out_ref.dtype)           # (tq, H)


# ------------------------------ helpers ------------------------------

def _pick_query_tile(seq_len):
    """256 on v6e/v7x, 128 on v5e (when divisible); otherwise the full sequence."""
    kind = ""
    try:
        kind = jax.devices()[0].device_kind.lower()
    except Exception:
        pass
    preferred = 128 if "v5" in kind else 256
    for t in (preferred, 128):
        if seq_len % t == 0:
            return t
    return seq_len


def _vmem_limit_bytes():
    """Derive the scoped-VMEM limit from the device's capacity (v7x has only 64 MiB)."""
    cap = 128 * 1024 * 1024
    try:
        cap = int(pltpu.get_tpu_info().vmem_capacity_bytes)
    except Exception:
        pass
    return int(min(cap * 3 // 4, 96 * 1024 * 1024))


def _pack_heads(w, b, num_heads, head_dim, scale=1.0):
    """torch nn.Linear (out,in) weight -> (nh, H, hd) bf16, bias -> (nh, 1, hd) f32."""
    hidden = w.shape[1]
    w_heads = (w.reshape(num_heads, head_dim, hidden).transpose(0, 2, 1) * scale)
    b_heads = (b.reshape(num_heads, 1, head_dim) * scale)
    return w_heads.astype(jnp.bfloat16), b_heads.astype(jnp.float32)


def _forward(x_bf16, mask, wq_h, bq_h, wk_h, bk_h, wv_h, bv_h, *,
             num_heads, head_dim, tq, single_buffer_consts):
    B, S, H = x_bf16.shape
    n_q_tiles = S // tq
    vmem_limit = _vmem_limit_bytes()

    def const_spec(shape, index_map):
        # Constant-index operands: single buffer (they are DMA'd once for the grid).
        if single_buffer_consts:
            return pl.BlockSpec(shape, index_map, pipeline_mode=pl.Buffered(1))
        return pl.BlockSpec(shape, index_map)

    # ---------------- stage 1: K / V projection (head-split, K transposed) ----------
    kv_cost = pl.CostEstimate(
        flops=4 * B * S * H * H,                       # K and V GEMMs
        transcendentals=0,
        bytes_accessed=(2 * B * S * H                  # x (bf16)
                        + 2 * 2 * H * H + 4 * 2 * H    # packed Wk/Wv + biases
                        + 2 * 2 * B * S * H),          # K^T + V outputs (bf16)
    )
    kT, v = pl.pallas_call(
        functools.partial(_kv_projection_kernel, num_heads=num_heads),
        out_shape=(
            jax.ShapeDtypeStruct((B, num_heads, head_dim, S), jnp.bfloat16),
            jax.ShapeDtypeStruct((B, num_heads, S, head_dim), jnp.bfloat16),
        ),
        grid=(B,),
        in_specs=[
            pl.BlockSpec((1, S, H), lambda b: (b, 0, 0)),                      # x (full seq)
            const_spec((num_heads, H, head_dim), lambda b: (0, 0, 0)),         # Wk heads
            const_spec((num_heads, 1, head_dim), lambda b: (0, 0, 0)),         # bk heads
            const_spec((num_heads, H, head_dim), lambda b: (0, 0, 0)),         # Wv heads
            const_spec((num_heads, 1, head_dim), lambda b: (0, 0, 0)),         # bv heads
        ],
        out_specs=(
            pl.BlockSpec((1, num_heads, head_dim, S), lambda b: (b, 0, 0, 0)),
            pl.BlockSpec((1, num_heads, S, head_dim), lambda b: (b, 0, 0, 0)),
        ),
        compiler_params=pltpu.CompilerParams(
            dimension_semantics=("parallel",),
            vmem_limit_bytes=vmem_limit,
        ),
        cost_estimate=kv_cost,
    )(x_bf16, wk_h, bk_h, wv_h, bv_h)

    # ---------------- stage 2: attention over (batch, query-tile) grid --------------
    attn_cost = pl.CostEstimate(
        flops=2 * B * S * H * H + 4 * B * S * S * H,   # Q GEMM + scores + context
        transcendentals=B * num_heads * S * S,          # exp in softmax
        bytes_accessed=(2 * B * S * H                   # x (bf16)
                        + 2 * 2 * B * S * H             # K^T + V (bf16)
                        + 4 * B * S                     # mask (f32)
                        + 2 * H * H + 4 * H             # Wq + bq
                        + 4 * B * S * H),               # output (f32)
    )
    out = pl.pallas_call(
        functools.partial(_attention_kernel, num_heads=num_heads),
        out_shape=jax.ShapeDtypeStruct((B, S, H), jnp.float32),
        grid=(B, n_q_tiles),
        in_specs=[
            pl.BlockSpec((1, tq, H), lambda b, qi: (b, qi, 0)),                        # x query tile
            pl.BlockSpec((1, num_heads, head_dim, S), lambda b, qi: (b, 0, 0, 0)),     # K^T (per batch)
            pl.BlockSpec((1, num_heads, S, head_dim), lambda b, qi: (b, 0, 0, 0)),     # V   (per batch)
            pl.BlockSpec((1, 1, S), lambda b, qi: (b, 0, 0)),                          # additive mask
            const_spec((num_heads, H, head_dim), lambda b, qi: (0, 0, 0)),             # Wq heads (scaled)
            const_spec((num_heads, 1, head_dim), lambda b, qi: (0, 0, 0)),             # bq heads (scaled)
        ],
        out_specs=pl.BlockSpec((1, tq, H), lambda b, qi: (b, qi, 0)),
        compiler_params=pltpu.CompilerParams(
            dimension_semantics=("parallel", "parallel"),   # no carry -> both axes parallel
            vmem_limit_bytes=vmem_limit,
        ),
        cost_estimate=attn_cost,
    )(x_bf16, kT, v, mask, wq_h, bq_h)
    return out


# ------------------------------ public wrapper ------------------------------

def m3bert_self_attention_pallas(x, attn_mask_add, params, *, num_heads):
    """x: (B, S, H) f32; attn_mask_add: (B, 1, S) f32 additive mask (0 keep / -10000 pad);
    params: torch-shaped (out, in) weights for query/key/value Linear layers."""
    B, S, H = x.shape
    head_dim = H // num_heads
    tq = _pick_query_tile(S)

    scale = 1.0 / math.sqrt(head_dim)
    # Fold 1/sqrt(head_dim) into Wq/bq; pack all projections head-split as (nh, H, hd).
    wq_h, bq_h = _pack_heads(params["wq"], params["bq"], num_heads, head_dim, scale)
    wk_h, bk_h = _pack_heads(params["wk"], params["bk"], num_heads, head_dim)
    wv_h, bv_h = _pack_heads(params["wv"], params["bv"], num_heads, head_dim)

    x_bf16 = x.astype(jnp.bfloat16)          # bf16 at the pallas_call boundary
    mask = attn_mask_add.astype(jnp.float32)

    kwargs = dict(num_heads=num_heads, head_dim=head_dim, tq=tq)
    try:
        return _forward(x_bf16, mask, wq_h, bq_h, wk_h, bk_h, wv_h, bv_h,
                        single_buffer_consts=True, **kwargs)
    except Exception:
        # TODO(synk): drop this fallback once pl.Buffered(1) single-buffering of
        #             constant-index operands is confirmed on all deployed jax versions.
        return _forward(x_bf16, mask, wq_h, bq_h, wk_h, bk_h, wv_h, bv_h,
                        single_buffer_consts=False, **kwargs)


# ------------------------------ plain-JAX reference ------------------------------

def m3bert_self_attention_reference(x, attn_mask_add, params, *, num_heads):
    B, S, H = x.shape
    hd = H // num_heads

    def linear(h, w, b):  # torch nn.Linear: y = h @ W^T + b
        return h @ w.T + b

    q = linear(x, params["wq"], params["bq"])
    k = linear(x, params["wk"], params["bk"])
    v = linear(x, params["wv"], params["bv"])

    def split(t):  # transpose_for_scores
        return t.reshape(B, S, num_heads, hd).transpose(0, 2, 1, 3)

    qh, kh, vh = split(q), split(k), split(v)
    scores = jnp.einsum("bhqd,bhkd->bhqk", qh, kh) / math.sqrt(hd)
    scores = scores + attn_mask_add[:, None, :, :]        # (B,1,1,S) broadcast
    probs = jax.nn.softmax(scores, axis=-1)               # dropout = identity (eval)
    ctx = jnp.einsum("bhqk,bhkd->bhqd", probs, vh)
    return ctx.transpose(0, 2, 1, 3).reshape(B, S, H)


# ------------------------------ main ------------------------------

if __name__ == "__main__":
    B, S, H = 2, 8, 32
    NUM_HEADS = 4

    key = jax.random.PRNGKey(0)
    keys = jax.random.split(key, 8)

    def w(k, shape):  # torch nn.Linear weight shape (out, in)
        return 0.02 * jax.random.normal(k, shape, dtype=jnp.float32)

    params = {
        "wq": w(keys[0], (H, H)), "bq": w(keys[1], (H,)),
        "wk": w(keys[2], (H, H)), "bk": w(keys[3], (H,)),
        "wv": w(keys[4], (H, H)), "bv": w(keys[5], (H,)),
    }

    x = jax.random.normal(keys[6], (B, S, H), dtype=jnp.float32)

    # Extended additive attention mask: 0 for valid tokens, -10000 for padding.
    lengths = jnp.array([S, 5], dtype=jnp.int32)
    valid = (jnp.arange(S)[None, :] < lengths[:, None]).astype(jnp.float32)   # (B, S)
    attn_mask_add = ((1.0 - valid) * -10000.0)[:, None, :]                    # (B, 1, S)

    out = m3bert_self_attention_pallas(x, attn_mask_add, params, num_heads=NUM_HEADS)
    out = jax.block_until_ready(out)

    ref = m3bert_self_attention_reference(x, attn_mask_add, params, num_heads=NUM_HEADS)
    # bf16 activations + bf16 MXU operands -> compare with bf16-consistent tolerance.
    if not bool(jnp.allclose(out, ref, atol=5e-3, rtol=5e-3)):
        err = float(jnp.max(jnp.abs(out - ref)))
        raise AssertionError(f"Pallas kernel output does not match reference (max abs err {err})")

    print("KERNEL_OK")
</pallas_src>

<mosaic_0001>
module attributes {stable_mosaic.version = 11 : i64} {
  func.func @_kv_projection_kernel(%arg0: i32, %arg1: memref<1x8x32xbf16, #tpu.memory_space<vmem>>, %arg2: memref<4x32x8xbf16, #tpu.memory_space<vmem>>, %arg3: memref<4x1x8xf32, #tpu.memory_space<vmem>>, %arg4: memref<4x32x8xbf16, #tpu.memory_space<vmem>>, %arg5: memref<4x1x8xf32, #tpu.memory_space<vmem>>, %arg6: memref<1x4x8x8xbf16, #tpu.memory_space<vmem>>, %arg7: memref<1x4x8x8xbf16, #tpu.memory_space<vmem>>) attributes {dimension_semantics = [#tpu.dimension_semantics<parallel>], iteration_bounds = array<i64: 2>, scalar_prefetch = 0 : i64, scratch_operands = 0 : i64, tpu.core_type = #tpu.core_type<tc>, window_params = [{transform_indices = @transform_0, window_bounds = array<i64: 1, 8, 32>}, {pipeline_mode = #tpu.pipeline_mode<synchronous>, transform_indices = @transform_1, window_bounds = array<i64: 4, 32, 8>}, {pipeline_mode = #tpu.pipeline_mode<synchronous>, transform_indices = @transform_2, window_bounds = array<i64: 4, 1, 8>}, {pipeline_mode = #tpu.pipeline_mode<synchronous>, transform_indices = @transform_3, window_bounds = array<i64: 4, 32, 8>}, {pipeline_mode = #tpu.pipeline_mode<synchronous>, transform_indices = @transform_4, window_bounds = array<i64: 4, 1, 8>}, {transform_indices = @transform_5, window_bounds = array<i64: 1, 4, 8, 8>}, {transform_indices = @transform_6, window_bounds = array<i64: 1, 4, 8, 8>}]} {
    %c0 = arith.constant 0 : index
    %c0_0 = arith.constant 0 : index
    %c0_1 = arith.constant 0 : index
    %0 = vector.load %arg1[%c0, %c0_0, %c0_1] : memref<1x8x32xbf16, #tpu.memory_space<vmem>>, vector<1x8x32xbf16>
    %1 = vector.shape_cast %0 : vector<1x8x32xbf16> to vector<8x32xbf16>
    %c0_2 = arith.constant 0 : index
    %c0_3 = arith.constant 0 : index
    %c0_4 = arith.constant 0 : index
    %2 = vector.load %arg2[%c0_2, %c0_3, %c0_4] : memref<4x32x8xbf16, #tpu.memory_space<vmem>>, vector<1x32x8xbf16>
    %3 = vector.shape_cast %2 : vector<1x32x8xbf16> to vector<32x8xbf16>
    %cst = arith.constant dense<0.000000e+00> : vector<8x8xf32>
    %4 = tpu.matmul %1, %3, %cst {dimension_numbers = #tpu.dot_dimension_numbers<[1], [0], [0], [1], [0, 0, 1, 1], [], []>} : vector<8x32xbf16>, vector<32x8xbf16>, vector<8x8xf32> -> vector<8x8xf32>
    %c0_5 = arith.constant 0 : index
    %c0_6 = arith.constant 0 : index
    %c0_7 = arith.constant 0 : index
    %5 = vector.load %arg3[%c0_5, %c0_6, %c0_7] : memref<4x1x8xf32, #tpu.memory_space<vmem>>, vector<1x1x8xf32>
    %6 = vector.shape_cast %5 : vector<1x1x8xf32> to vector<1x8xf32>
    %7 = vector.broadcast %6 : vector<1x8xf32> to vector<8x8xf32>
    %8 = arith.addf %4, %7 : vector<8x8xf32>
    %9 = tpu.transpose %8, [1, 0] : vector<8x8xf32> -> vector<8x8xf32>
    %10 = arith.truncf %9 : vector<8x8xf32> to vector<8x8xbf16>
    %c0_8 = arith.constant 0 : index
    %c0_9 = arith.constant 0 : index
    %c0_10 = arith.constant 0 : index
    %c0_11 = arith.constant 0 : index
    %11 = vector.load %arg6[%c0_8, %c0_9, %c0_10, %c0_11] : memref<1x4x8x8xbf16, #tpu.memory_space<vmem>>, vector<1x1x8x8xbf16>
    %12 = vector.shape_cast %11 : vector<1x1x8x8xbf16> to vector<8x8xbf16>
    %13 = vector.shape_cast %10 : vector<8x8xbf16> to vector<1x1x8x8xbf16>
    tpu.vector_store %arg6[%c0_8, %c0_9, %c0_10, %c0_11], %13 {strides = array<i32>} : memref<1x4x8x8xbf16, #tpu.memory_space<vmem>>, vector<1x1x8x8xbf16>,
    %c0_12 = arith.constant 0 : index
    %c0_13 = arith.constant 0 : index
    %c0_14 = arith.constant 0 : index
    %14 = vector.load %arg4[%c0_12, %c0_13, %c0_14] : memref<4x32x8xbf16, #tpu.memory_space<vmem>>, vector<1x32x8xbf16>
    %15 = vector.shape_cast %14 : vector<1x32x8xbf16> to vector<32x8xbf16>
    %cst_15 = arith.constant dense<0.000000e+00> : vector<8x8xf32>
    %16 = tpu.matmul %1, %15, %cst_15 {dimension_numbers = #tpu.dot_dimension_numbers<[1], [0], [0], [1], [0, 0, 1, 1], [], []>} : vector<8x32xbf16>, vector<32x8xbf16>, vector<8x8xf32> -> vector<8x8xf32>
    %c0_16 = arith.constant 0 : index
    %c0_17 = arith.constant 0 : index
    %c0_18 = arith.constant 0 : index
    %17 = vector.load %arg5[%c0_16, %c0_17, %c0_18] : memref<4x1x8xf32, #tpu.memory_space<vmem>>, vector<1x1x8xf32>
    %18 = vector.shape_cast %17 : vector<1x1x8xf32> to vector<1x8xf32>
    %19 = vector.broadcast %18 : vector<1x8xf32> to vector<8x8xf32>
    %20 = arith.addf %16, %19 : vector<8x8xf32>
    %21 = arith.truncf %20 : vector<8x8xf32> to vector<8x8xbf16>
    %c0_19 = arith.constant 0 : index
    %c0_20 = arith.constant 0 : index
    %c0_21 = arith.constant 0 : index
    %c0_22 = arith.constant 0 : index
    %22 = vector.load %arg7[%c0_19, %c0_20, %c0_21, %c0_22] : memref<1x4x8x8xbf16, #tpu.memory_space<vmem>>, vector<1x1x8x8xbf16>
    %23 = vector.shape_cast %22 : vector<1x1x8x8xbf16> to vector<8x8xbf16>
    %24 = vector.shape_cast %21 : vector<8x8xbf16> to vector<1x1x8x8xbf16>
    tpu.vector_store %arg7[%c0_19, %c0_20, %c0_21, %c0_22], %24 {strides = array<i32>} : memref<1x4x8x8xbf16, #tpu.memory_space<vmem>>, vector<1x1x8x8xbf16>,
    %c1 = arith.constant 1 : index
    %c0_23 = arith.constant 0 : index
    %c0_24 = arith.constant 0 : index
    %25 = vector.load %arg2[%c1, %c0_23, %c0_24] : memref<4x32x8xbf16, #tpu.memory_space<vmem>>, vector<1x32x8xbf16>
    %26 = vector.shape_cast %25 : vector<1x32x8xbf16> to vector<32x8xbf16>
    %cst_25 = arith.constant dense<0.000000e+00> : vector<8x8xf32>
    %27 = tpu.matmul %1, %26, %cst_25 {dimension_numbers = #tpu.dot_dimension_numbers<[1], [0], [0], [1], [0, 0, 1, 1], [], []>} : vector<8x32xbf16>, vector<32x8xbf16>, vector<8x8xf32> -> vector<8x8xf32>
    %c1_26 = arith.constant 1 : index
    %c0_27 = arith.constant 0 : index
    %c0_28 = arith.constant 0 : index
    %28 = vector.load %arg3[%c1_26, %c0_27, %c0_28] : memref<4x1x8xf32, #tpu.memory_space<vmem>>, vector<1x1x8xf32>
    %29 = vector.shape_cast %28 : vector<1x1x8xf32> to vector<1x8xf32>
    %30 = vector.broadcast %29 : vector<1x8xf32> to vector<8x8xf32>
    %31 = arith.addf %27, %30 : vector<8x8xf32>
    %32 = tpu.transpose %31, [1, 0] : vector<8x8xf32> -> vector<8x8xf32>
    %33 = arith.truncf %32 : vector<8x8xf32> to vector<8x8xbf16>
    %c0_29 = arith.constant 0 : index
    %c1_30 = arith.constant 1 : index
    %c0_31 = arith.constant 0 : index
    %c0_32 = arith.constant 0 : index
    %34 = vector.load %arg6[%c0_29, %c1_30, %c0_31, %c0_32] : memref<1x4x8x8xbf16, #tpu.memory_space<vmem>>, vector<1x1x8x8xbf16>
    %35 = vector.shape_cast %34 : vector<1x1x8x8xbf16> to vector<8x8xbf16>
    %36 = vector.shape_cast %33 : vector<8x8xbf16> to vector<1x1x8x8xbf16>
    tpu.vector_store %arg6[%c0_29, %c1_30, %c0_31, %c0_32], %36 {strides = array<i32>} : memref<1x4x8x8xbf16, #tpu.memory_space<vmem>>, vector<1x1x8x8xbf16>,
    %c1_33 = arith.constant 1 : index
    %c0_34 = arith.constant 0 : index
    %c0_35 = arith.constant 0 : index
    %37 = vector.load %arg4[%c1_33, %c0_34, %c0_35] : memref<4x32x8xbf16, #tpu.memory_space<vmem>>, vector<1x32x8xbf16>
    %38 = vector.shape_cast %37 : vector<1x32x8xbf16> to vector<32x8xbf16>
    %cst_36 = arith.constant dense<0.000000e+00> : vector<8x8xf32>
    %39 = tpu.matmul %1, %38, %cst_36 {dimension_numbers = #tpu.dot_dimension_numbers<[1], [0], [0], [1], [0, 0, 1, 1], [], []>} : vector<8x32xbf16>, vector<32x8xbf16>, vector<8x8xf32> -> vector<8x8xf32>
    %c1_37 = arith.constant 1 : index
    %c0_38 = arith.constant 0 : index
    %c0_39 = arith.constant 0 : index
    %40 = vector.load %arg5[%c1_37, %c0_38, %c0_39] : memref<4x1x8xf32, #tpu.memory_space<vmem>>, vector<1x1x8xf32>
    %41 = vector.shape_cast %40 : vector<1x1x8xf32> to vector<1x8xf32>
    %42 = vector.broadcast %41 : vector<1x8xf32> to vector<8x8xf32>
    %43 = arith.addf %39, %42 : vector<8x8xf32>
    %44 = arith.truncf %43 : vector<8x8xf32> to vector<8x8xbf16>
    %c0_40 = arith.constant 0 : index
    %c1_41 = arith.constant 1 : index
    %c0_42 = arith.constant 0 : index
    %c0_43 = arith.constant 0 : index
    %45 = vector.load %arg7[%c0_40, %c1_41, %c0_42, %c0_43] : memref<1x4x8x8xbf16, #tpu.memory_space<vmem>>, vector<1x1x8x8xbf16>
    %46 = vector.shape_cast %45 : vector<1x1x8x8xbf16> to vector<8x8xbf16>
    %47 = vector.shape_cast %44 : vector<8x8xbf16> to vector<1x1x8x8xbf16>
    tpu.vector_store %arg7[%c0_40, %c1_41, %c0_42, %c0_43], %47 {strides = array<i32>} : memref<1x4x8x8xbf16, #tpu.memory_space<vmem>>, vector<1x1x8x8xbf16>,
    %c2 = arith.constant 2 : index
    %c0_44 = arith.constant 0 : index
    %c0_45 = arith.constant 0 : index
    %48 = vector.load %arg2[%c2, %c0_44, %c0_45] : memref<4x32x8xbf16, #tpu.memory_space<vmem>>, vector<1x32x8xbf16>
    %49 = vector.shape_cast %48 : vector<1x32x8xbf16> to vector<32x8xbf16>
    %cst_46 = arith.constant dense<0.000000e+00> : vector<8x8xf32>
    %50 = tpu.matmul %1, %49, %cst_46 {dimension_numbers = #tpu.dot_dimension_numbers<[1], [0], [0], [1], [0, 0, 1, 1], [], []>} : vector<8x32xbf16>, vector<32x8xbf16>, vector<8x8xf32> -> vector<8x8xf32>
    %c2_47 = arith.constant 2 : index
    %c0_48 = arith.constant 0 : index
    %c0_49 = arith.constant 0 : index
    %51 = vector.load %arg3[%c2_47, %c0_48, %c0_49] : memref<4x1x8xf32, #tpu.memory_space<vmem>>, vector<1x1x8xf32>
    %52 = vector.shape_cast %51 : vector<1x1x8xf32> to vector<1x8xf32>
    %53 = vector.broadcast %52 : vector<1x8xf32> to vector<8x8xf32>
    %54 = arith.addf %50, %53 : vector<8x8xf32>
    %55 = tpu.transpose %54, [1, 0] : vector<8x8xf32> -> vector<8x8xf32>
    %56 = arith.truncf %55 : vector<8x8xf32> to vector<8x8xbf16>
    %c0_50 = arith.constant 0 : index
    %c2_51 = arith.constant 2 : index
    %c0_52 = arith.constant 0 : index
    %c0_53 = arith.constant 0 : index
    %57 = vector.load %arg6[%c0_50, %c2_51, %c0_52, %c0_53] : memref<1x4x8x8xbf16, #tpu.memory_space<vmem>>, vector<1x1x8x8xbf16>
    %58 = vector.shape_cast %57 : vector<1x1x8x8xbf16> to vector<8x8xbf16>
    %59 = vector.shape_cast %56 : vector<8x8xbf16> to vector<1x1x8x8xbf16>
    tpu.vector_store %arg6[%c0_50, %c2_51, %c0_52, %c0_53], %59 {strides = array<i32>} : memref<1x4x8x8xbf16, #tpu.memory_space<vmem>>, vector<1x1x8x8xbf16>,
    %c2_54 = arith.constant 2 : index
    %c0_55 = arith.constant 0 : index
    %c0_56 = arith.constant 0 : index
    %60 = vector.load %arg4[%c2_54, %c0_55, %c0_56] : memref<4x32x8xbf16, #tpu.memory_space<vmem>>, vector<1x32x8xbf16>
    %61 = vector.shape_cast %60 : vector<1x32x8xbf16> to vector<32x8xbf16>
    %cst_57 = arith.constant dense<0.000000e+00> : vector<8x8xf32>
    %62 = tpu.matmul %1, %61, %cst_57 {dimension_numbers = #tpu.dot_dimension_numbers<[1], [0], [0], [1], [0, 0, 1, 1], [], []>} : vector<8x32xbf16>, vector<32x8xbf16>, vector<8x8xf32> -> vector<8x8xf32>
    %c2_58 = arith.constant 2 : index
    %c0_59 = arith.constant 0 : index
    %c0_60 = arith.constant 0 : index
    %63 = vector.load %arg5[%c2_58, %c0_59, %c0_60] : memref<4x1x8xf32, #tpu.memory_space<vmem>>, vector<1x1x8xf32>
    %64 = vector.shape_cast %63 : vector<1x1x8xf32> to vector<1x8xf32>
    %65 = vector.broadcast %64 : vector<1x8xf32> to vector<8x8xf32>
    %66 = arith.addf %62, %65 : vector<8x8xf32>
    %67 = arith.truncf %66 : vector<8x8xf32> to vector<8x8xbf16>
    %c0_61 = arith.constant 0 : index
    %c2_62 = arith.constant 2 : index
    %c0_63 = arith.constant 0 : index
    %c0_64 = arith.constant 0 : index
    %68 = vector.load %arg7[%c0_61, %c2_62, %c0_63, %c0_64] : memref<1x4x8x8xbf16, #tpu.memory_space<vmem>>, vector<1x1x8x8xbf16>
    %69 = vector.shape_cast %68 : vector<1x1x8x8xbf16> to vector<8x8xbf16>
    %70 = vector.shape_cast %67 : vector<8x8xbf16> to vector<1x1x8x8xbf16>
    tpu.vector_store %arg7[%c0_61, %c2_62, %c0_63, %c0_64], %70 {strides = array<i32>} : memref<1x4x8x8xbf16, #tpu.memory_space<vmem>>, vector<1x1x8x8xbf16>,
    %c3 = arith.constant 3 : index
    %c0_65 = arith.constant 0 : index
    %c0_66 = arith.constant 0 : index
    %71 = vector.load %arg2[%c3, %c0_65, %c0_66] : memref<4x32x8xbf16, #tpu.memory_space<vmem>>, vector<1x32x8xbf16>
    %72 = vector.shape_cast %71 : vector<1x32x8xbf16> to vector<32x8xbf16>
    %cst_67 = arith.constant dense<0.000000e+00> : vector<8x8xf32>
    %73 = tpu.matmul %1, %72, %cst_67 {dimension_numbers = #tpu.dot_dimension_numbers<[1], [0], [0], [1], [0, 0, 1, 1], [], []>} : vector<8x32xbf16>, vector<32x8xbf16>, vector<8x8xf32> -> vector<8x8xf32>
    %c3_68 = arith.constant 3 : index
    %c0_69 = arith.constant 0 : index
    %c0_70 = arith.constant 0 : index
    %74 = vector.load %arg3[%c3_68, %c0_69, %c0_70] : memref<4x1x8xf32, #tpu.memory_space<vmem>>, vector<1x1x8xf32>
    %75 = vector.shape_cast %74 : vector<1x1x8xf32> to vector<1x8xf32>
    %76 = vector.broadcast %75 : vector<1x8xf32> to vector<8x8xf32>
    %77 = arith.addf %73, %76 : vector<8x8xf32>
    %78 = tpu.transpose %77, [1, 0] : vector<8x8xf32> -> vector<8x8xf32>
    %79 = arith.truncf %78 : vector<8x8xf32> to vector<8x8xbf16>
    %c0_71 = arith.constant 0 : index
    %c3_72 = arith.constant 3 : index
    %c0_73 = arith.constant 0 : index
    %c0_74 = arith.constant 0 : index
    %80 = vector.load %arg6[%c0_71, %c3_72, %c0_73, %c0_74] : memref<1x4x8x8xbf16, #tpu.memory_space<vmem>>, vector<1x1x8x8xbf16>
    %81 = vector.shape_cast %80 : vector<1x1x8x8xbf16> to vector<8x8xbf16>
    %82 = vector.shape_cast %79 : vector<8x8xbf16> to vector<1x1x8x8xbf16>
    tpu.vector_store %arg6[%c0_71, %c3_72, %c0_73, %c0_74], %82 {strides = array<i32>} : memref<1x4x8x8xbf16, #tpu.memory_space<vmem>>, vector<1x1x8x8xbf16>,
    %c3_75 = arith.constant 3 : index
    %c0_76 = arith.constant 0 : index
    %c0_77 = arith.constant 0 : index
    %83 = vector.load %arg4[%c3_75, %c0_76, %c0_77] : memref<4x32x8xbf16, #tpu.memory_space<vmem>>, vector<1x32x8xbf16>
    %84 = vector.shape_cast %83 : vector<1x32x8xbf16> to vector<32x8xbf16>
    %cst_78 = arith.constant dense<0.000000e+00> : vector<8x8xf32>
    %85 = tpu.matmul %1, %84, %cst_78 {dimension_numbers = #tpu.dot_dimension_numbers<[1], [0], [0], [1], [0, 0, 1, 1], [], []>} : vector<8x32xbf16>, vector<32x8xbf16>, vector<8x8xf32> -> vector<8x8xf32>
    %c3_79 = arith.constant 3 : index
    %c0_80 = arith.constant 0 : index
    %c0_81 = arith.constant 0 : index
    %86 = vector.load %arg5[%c3_79, %c0_80, %c0_81] : memref<4x1x8xf32, #tpu.memory_space<vmem>>, vector<1x1x8xf32>
    %87 = vector.shape_cast %86 : vector<1x1x8xf32> to vector<1x8xf32>
    %88 = vector.broadcast %87 : vector<1x8xf32> to vector<8x8xf32>
    %89 = arith.addf %85, %88 : vector<8x8xf32>
    %90 = arith.truncf %89 : vector<8x8xf32> to vector<8x8xbf16>
    %c0_82 = arith.constant 0 : index
    %c3_83 = arith.constant 3 : index
    %c0_84 = arith.constant 0 : index
    %c0_85 = arith.constant 0 : index
    %91 = vector.load %arg7[%c0_82, %c3_83, %c0_84, %c0_85] : memref<1x4x8x8xbf16, #tpu.memory_space<vmem>>, vector<1x1x8x8xbf16>
    %92 = vector.shape_cast %91 : vector<1x1x8x8xbf16> to vector<8x8xbf16>
    %93 = vector.shape_cast %90 : vector<8x8xbf16> to vector<1x1x8x8xbf16>
    tpu.vector_store %arg7[%c0_82, %c3_83, %c0_84, %c0_85], %93 {strides = array<i32>} : memref<1x4x8x8xbf16, #tpu.memory_space<vmem>>, vector<1x1x8x8xbf16>,
    return
  }
  func.func @transform_0(%arg0: i32) -> (i32, i32, i32) {
    %c0_i32 = arith.constant 0 : i32
    %c0_i32_0 = arith.constant 0 : i32
    %c0_i32_1 = arith.constant 0 : i32
    return %arg0, %c0_i32, %c0_i32_0 : i32, i32, i32
  }
  func.func @transform_1(%arg0: i32) -> (i32, i32, i32) {
    %c0_i32 = arith.constant 0 : i32
    %c0_i32_0 = arith.constant 0 : i32
    %c0_i32_1 = arith.constant 0 : i32
    %c0_i32_2 = arith.constant 0 : i32
    return %c0_i32, %c0_i32_0, %c0_i32_1 : i32, i32, i32
  }
  func.func @transform_2(%arg0: i32) -> (i32, i32, i32) {
    %c0_i32 = arith.constant 0 : i32
    %c0_i32_0 = arith.constant 0 : i32
    %c0_i32_1 = arith.constant 0 : i32
    %c0_i32_2 = arith.constant 0 : i32
    return %c0_i32, %c0_i32_0, %c0_i32_1 : i32, i32, i32
  }
  func.func @transform_3(%arg0: i32) -> (i32, i32, i32) {
    %c0_i32 = arith.constant 0 : i32
    %c0_i32_0 = arith.constant 0 : i32
    %c0_i32_1 = arith.constant 0 : i32
    %c0_i32_2 = arith.constant 0 : i32
    return %c0_i32, %c0_i32_0, %c0_i32_1 : i32, i32, i32
  }
  func.func @transform_4(%arg0: i32) -> (i32, i32, i32) {
    %c0_i32 = arith.constant 0 : i32
    %c0_i32_0 = arith.constant 0 : i32
    %c0_i32_1 = arith.constant 0 : i32
    %c0_i32_2 = arith.constant 0 : i32
    return %c0_i32, %c0_i32_0, %c0_i32_1 : i32, i32, i32
  }
  func.func @transform_5(%arg0: i32) -> (i32, i32, i32, i32) {
    %c0_i32 = arith.constant 0 : i32
    %c0_i32_0 = arith.constant 0 : i32
    %c0_i32_1 = arith.constant 0 : i32
    %c0_i32_2 = arith.constant 0 : i32
    return %arg0, %c0_i32, %c0_i32_0, %c0_i32_1 : i32, i32, i32, i32
  }
  func.func @transform_6(%arg0: i32) -> (i32, i32, i32, i32) {
    %c0_i32 = arith.constant 0 : i32
    %c0_i32_0 = arith.constant 0 : i32
    %c0_i32_1 = arith.constant 0 : i32
    %c0_i32_2 = arith.constant 0 : i32
    return %arg0, %c0_i32, %c0_i32_0, %c0_i32_1 : i32, i32, i32, i32
  }
}

module attributes {stable_mosaic.version = 11 : i64} {
  func.func @_kv_projection_kernel(%arg0: i32, %arg1: memref<1x8x32xbf16, #tpu.memory_space<vmem>>, %arg2: memref<4x32x8xbf16, #tpu.memory_space<vmem>>, %arg3: memref<4x1x8xf32, #tpu.memory_space<vmem>>, %arg4: memref<4x32x8xbf16, #tpu.memory_space<vmem>>, %arg5: memref<4x1x8xf32, #tpu.memory_space<vmem>>, %arg6: memref<1x4x8x8xbf16, #tpu.memory_space<vmem>>, %arg7: memref<1x4x8x8xbf16, #tpu.memory_space<vmem>>) attributes {dimension_semantics = [#tpu.dimension_semantics<parallel>], iteration_bounds = array<i64: 2>, scalar_prefetch = 0 : i64, scratch_operands = 0 : i64, tpu.core_type = #tpu.core_type<tc>, window_params = [{transform_indices = @transform_0, window_bounds = array<i64: 1, 8, 32>}, {pipeline_mode = #tpu.pipeline_mode<synchronous>, transform_indices = @transform_1, window_bounds = array<i64: 4, 32, 8>}, {pipeline_mode = #tpu.pipeline_mode<synchronous>, transform_indices = @transform_2, window_bounds = array<i64: 4, 1, 8>}, {pipeline_mode = #tpu.pipeline_mode<synchronous>, transform_indices = @transform_3, window_bounds = array<i64: 4, 32, 8>}, {pipeline_mode = #tpu.pipeline_mode<synchronous>, transform_indices = @transform_4, window_bounds = array<i64: 4, 1, 8>}, {transform_indices = @transform_5, window_bounds = array<i64: 1, 4, 8, 8>}, {transform_indices = @transform_6, window_bounds = array<i64: 1, 4, 8, 8>}]} {
    %c0 = arith.constant 0 : index
    %c0_0 = arith.constant 0 : index
    %c0_1 = arith.constant 0 : index
    %0 = vector.load %arg1[%c0, %c0_0, %c0_1] : memref<1x8x32xbf16, #tpu.memory_space<vmem>>, vector<1x8x32xbf16>
    %1 = vector.shape_cast %0 : vector<1x8x32xbf16> to vector<8x32xbf16>
    %c0_2 = arith.constant 0 : index
    %c0_3 = arith.constant 0 : index
    %c0_4 = arith.constant 0 : index
    %2 = vector.load %arg2[%c0_2, %c0_3, %c0_4] : memref<4x32x8xbf16, #tpu.memory_space<vmem>>, vector<1x32x8xbf16>
    %3 = vector.shape_cast %2 : vector<1x32x8xbf16> to vector<32x8xbf16>
    %cst = arith.constant dense<0.000000e+00> : vector<8x8xf32>
    %4 = tpu.matmul %1, %3, %cst {dimension_numbers = #tpu.dot_dimension_numbers<[1], [0], [0], [1], [0, 0, 1, 1], [], []>} : vector<8x32xbf16>, vector<32x8xbf16>, vector<8x8xf32> -> vector<8x8xf32>
    %c0_5 = arith.constant 0 : index
    %c0_6 = arith.constant 0 : index
    %c0_7 = arith.constant 0 : index
    %5 = vector.load %arg3[%c0_5, %c0_6, %c0_7] : memref<4x1x8xf32, #tpu.memory_space<vmem>>, vector<1x1x8xf32>
    %6 = vector.shape_cast %5 : vector<1x1x8xf32> to vector<1x8xf32>
    %7 = vector.broadcast %6 : vector<1x8xf32> to vector<8x8xf32>
    %8 = arith.addf %4, %7 : vector<8x8xf32>
    %9 = tpu.transpose %8, [1, 0] : vector<8x8xf32> -> vector<8x8xf32>
    %10 = arith.truncf %9 : vector<8x8xf32> to vector<8x8xbf16>
    %c0_8 = arith.constant 0 : index
    %c0_9 = arith.constant 0 : index
    %c0_10 = arith.constant 0 : index
    %c0_11 = arith.constant 0 : index
    %11 = vector.load %arg6[%c0_8, %c0_9, %c0_10, %c0_11] : memref<1x4x8x8xbf16, #tpu.memory_space<vmem>>, vector<1x1x8x8xbf16>
    %12 = vector.shape_cast %11 : vector<1x1x8x8xbf16> to vector<8x8xbf16>
    %13 = vector.shape_cast %10 : vector<8x8xbf16> to vector<1x1x8x8xbf16>
    tpu.vector_store %arg6[%c0_8, %c0_9, %c0_10, %c0_11], %13 {strides = array<i32>} : memref<1x4x8x8xbf16, #tpu.memory_space<vmem>>, vector<1x1x8x8xbf16>,
    %c0_12 = arith.constant 0 : index
    %c0_13 = arith.constant 0 : index
    %c0_14 = arith.constant 0 : index
    %14 = vector.load %arg4[%c0_12, %c0_13, %c0_14] : memref<4x32x8xbf16, #tpu.memory_space<vmem>>, vector<1x32x8xbf16>
    %15 = vector.shape_cast %14 : vector<1x32x8xbf16> to vector<32x8xbf16>
    %cst_15 = arith.constant dense<0.000000e+00> : vector<8x8xf32>
    %16 = tpu.matmul %1, %15, %cst_15 {dimension_numbers = #tpu.dot_dimension_numbers<[1], [0], [0], [1], [0, 0, 1, 1], [], []>} : vector<8x32xbf16>, vector<32x8xbf16>, vector<8x8xf32> -> vector<8x8xf32>
    %c0_16 = arith.constant 0 : index
    %c0_17 = arith.constant 0 : index
    %c0_18 = arith.constant 0 : index
    %17 = vector.load %arg5[%c0_16, %c0_17, %c0_18] : memref<4x1x8xf32, #tpu.memory_space<vmem>>, vector<1x1x8xf32>
    %18 = vector.shape_cast %17 : vector<1x1x8xf32> to vector<1x8xf32>
    %19 = vector.broadcast %18 : vector<1x8xf32> to vector<8x8xf32>
    %20 = arith.addf %16, %19 : vector<8x8xf32>
    %21 = arith.truncf %20 : vector<8x8xf32> to vector<8x8xbf16>
    %c0_19 = arith.constant 0 : index
    %c0_20 = arith.constant 0 : index
    %c0_21 = arith.constant 0 : index
    %c0_22 = arith.constant 0 : index
    %22 = vector.load %arg7[%c0_19, %c0_20, %c0_21, %c0_22] : memref<1x4x8x8xbf16, #tpu.memory_space<vmem>>, vector<1x1x8x8xbf16>
    %23 = vector.shape_cast %22 : vector<1x1x8x8xbf16> to vector<8x8xbf16>
    %24 = vector.shape_cast %21 : vector<8x8xbf16> to vector<1x1x8x8xbf16>
    tpu.vector_store %arg7[%c0_19, %c0_20, %c0_21, %c0_22], %24 {strides = array<i32>} : memref<1x4x8x8xbf16, #tpu.memory_space<vmem>>, vector<1x1x8x8xbf16>,
    %c1 = arith.constant 1 : index
    %c0_23 = arith.constant 0 : index
    %c0_24 = arith.constant 0 : index
    %25 = vector.load %arg2[%c1, %c0_23, %c0_24] : memref<4x32x8xbf16, #tpu.memory_space<vmem>>, vector<1x32x8xbf16>
    %26 = vector.shape_cast %25 : vector<1x32x8xbf16> to vector<32x8xbf16>
    %cst_25 = arith.constant dense<0.000000e+00> : vector<8x8xf32>
    %27 = tpu.matmul %1, %26, %cst_25 {dimension_numbers = #tpu.dot_dimension_numbers<[1], [0], [0], [1], [0, 0, 1, 1], [], []>} : vector<8x32xbf16>, vector<32x8xbf16>, vector<8x8xf32> -> vector<8x8xf32>
    %c1_26 = arith.constant 1 : index
    %c0_27 = arith.constant 0 : index
    %c0_28 = arith.constant 0 : index
    %28 = vector.load %arg3[%c1_26, %c0_27, %c0_28] : memref<4x1x8xf32, #tpu.memory_space<vmem>>, vector<1x1x8xf32>
    %29 = vector.shape_cast %28 : vector<1x1x8xf32> to vector<1x8xf32>
    %30 = vector.broadcast %29 : vector<1x8xf32> to vector<8x8xf32>
    %31 = arith.addf %27, %30 : vector<8x8xf32>
    %32 = tpu.transpose %31, [1, 0] : vector<8x8xf32> -> vector<8x8xf32>
    %33 = arith.truncf %32 : vector<8x8xf32> to vector<8x8xbf16>
    %c0_29 = arith.constant 0 : index
    %c1_30 = arith.constant 1 : index
    %c0_31 = arith.constant 0 : index
    %c0_32 = arith.constant 0 : index
    %34 = vector.load %arg6[%c0_29, %c1_30, %c0_31, %c0_32] : memref<1x4x8x8xbf16, #tpu.memory_space<vmem>>, vector<1x1x8x8xbf16>
    %35 = vector.shape_cast %34 : vector<1x1x8x8xbf16> to vector<8x8xbf16>
    %36 = vector.shape_cast %33 : vector<8x8xbf16> to vector<1x1x8x8xbf16>
    tpu.vector_store %arg6[%c0_29, %c1_30, %c0_31, %c0_32], %36 {strides = array<i32>} : memref<1x4x8x8xbf16, #tpu.memory_space<vmem>>, vector<1x1x8x8xbf16>,
    %c1_33 = arith.constant 1 : index
    %c0_34 = arith.constant 0 : index
    %c0_35 = arith.constant 0 : index
    %37 = vector.load %arg4[%c1_33, %c0_34, %c0_35] : memref<4x32x8xbf16, #tpu.memory_space<vmem>>, vector<1x32x8xbf16>
    %38 = vector.shape_cast %37 : vector<1x32x8xbf16> to vector<32x8xbf16>
    %cst_36 = arith.constant dense<0.000000e+00> : vector<8x8xf32>
    %39 = tpu.matmul %1, %38, %cst_36 {dimension_numbers = #tpu.dot_dimension_numbers<[1], [0], [0], [1], [0, 0, 1, 1], [], []>} : vector<8x32xbf16>, vector<32x8xbf16>, vector<8x8xf32> -> vector<8x8xf32>
    %c1_37 = arith.constant 1 : index
    %c0_38 = arith.constant 0 : index
    %c0_39 = arith.constant 0 : index
    %40 = vector.load %arg5[%c1_37, %c0_38, %c0_39] : memref<4x1x8xf32, #tpu.memory_space<vmem>>, vector<1x1x8xf32>
    %41 = vector.shape_cast %40 : vector<1x1x8xf32> to vector<1x8xf32>
    %42 = vector.broadcast %41 : vector<1x8xf32> to vector<8x8xf32>
    %43 = arith.addf %39, %42 : vector<8x8xf32>
    %44 = arith.truncf %43 : vector<8x8xf32> to vector<8x8xbf16>
    %c0_40 = arith.constant 0 : index
    %c1_41 = arith.constant 1 : index
    %c0_42 = arith.constant 0 : index
    %c0_43 = arith.constant 0 : index
    %45 = vector.load %arg7[%c0_40, %c1_41, %c0_42, %c0_43] : memref<1x4x8x8xbf16, #tpu.memory_space<vmem>>, vector<1x1x8x8xbf16>
    %46 = vector.shape_cast %45 : vector<1x1x8x8xbf16> to vector<8x8xbf16>
    %47 = vector.shape_cast %44 : vector<8x8xbf16> to vector<1x1x8x8xbf16>
    tpu.vector_store %arg7[%c0_40, %c1_41, %c0_42, %c0_43], %47 {strides = array<i32>} : memref<1x4x8x8xbf16, #tpu.memory_space<vmem>>, vector<1x1x8x8xbf16>,
    %c2 = arith.constant 2 : index
    %c0_44 = arith.constant 0 : index
    %c0_45 = arith.constant 0 : index
    %48 = vector.load %arg2[%c2, %c0_44, %c0_45] : memref<4x32x8xbf16, #tpu.memory_space<vmem>>, vector<1x32x8xbf16>
    %49 = vector.shape_cast %48 : vector<1x32x8xbf16> to vector<32x8xbf16>
    %cst_46 = arith.constant dense<0.000000e+00> : vector<8x8xf32>
    %50 = tpu.matmul %1, %49, %cst_46 {dimension_numbers = #tpu.dot_dimension_numbers<[1], [0], [0], [1], [0, 0, 1, 1], [], []>} : vector<8x32xbf16>, vector<32x8xbf16>, vector<8x8xf32> -> vector<8x8xf32>
    %c2_47 = arith.constant 2 : index
    %c0_48 = arith.constant 0 : index
    %c0_49 = arith.constant 0 : index
    %51 = vector.load %arg3[%c2_47, %c0_48, %c0_49] : memref<4x1x8xf32, #tpu.memory_space<vmem>>, vector<1x1x8xf32>
    %52 = vector.shape_cast %51 : vector<1x1x8xf32> to vector<1x8xf32>
    %53 = vector.broadcast %52 : vector<1x8xf32> to vector<8x8xf32>
    %54 = arith.addf %50, %53 : vector<8x8xf32>
    %55 = tpu.transpose %54, [1, 0] : vector<8x8xf32> -> vector<8x8xf32>
    %56 = arith.truncf %55 : vector<8x8xf32> to vector<8x8xbf16>
    %c0_50 = arith.constant 0 : index
    %c2_51 = arith.constant 2 : index
    %c0_52 = arith.constant 0 : index
    %c0_53 = arith.constant 0 : index
    %57 = vector.load %arg6[%c0_50, %c2_51, %c0_52, %c0_53] : memref<1x4x8x8xbf16, #tpu.memory_space<vmem>>, vector<1x1x8x8xbf16>
    %58 = vector.shape_cast %57 : vector<1x1x8x8xbf16> to vector<8x8xbf16>
    %59 = vector.shape_cast %56 : vector<8x8xbf16> to vector<1x1x8x8xbf16>
    tpu.vector_store %arg6[%c0_50, %c2_51, %c0_52, %c0_53], %59 {strides = array<i32>} : memref<1x4x8x8xbf16, #tpu.memory_space<vmem>>, vector<1x1x8x8xbf16>,
    %c2_54 = arith.constant 2 : index
    %c0_55 = arith.constant 0 : index
    %c0_56 = arith.constant 0 : index
    %60 = vector.load %arg4[%c2_54, %c0_55, %c0_56] : memref<4x32x8xbf16, #tpu.memory_space<vmem>>, vector<1x32x8xbf16>
    %61 = vector.shape_cast %60 : vector<1x32x8xbf16> to vector<32x8xbf16>
    %cst_57 = arith.constant dense<0.000000e+00> : vector<8x8xf32>
    %62 = tpu.matmul %1, %61, %cst_57 {dimension_numbers = #tpu.dot_dimension_numbers<[1], [0], [0], [1], [0, 0, 1, 1], [], []>} : vector<8x32xbf16>, vector<32x8xbf16>, vector<8x8xf32> -> vector<8x8xf32>
    %c2_58 = arith.constant 2 : index
    %c0_59 = arith.constant 0 : index
    %c0_60 = arith.constant 0 : index
    %63 = vector.load %arg5[%c2_58, %c0_59, %c0_60] : memref<4x1x8xf32, #tpu.memory_space<vmem>>, vector<1x1x8xf32>
    %64 = vector.shape_cast %63 : vector<1x1x8xf32> to vector<1x8xf32>
    %65 = vector.broadcast %64 : vector<1x8xf32> to vector<8x8xf32>
    %66 = arith.addf %62, %65 : vector<8x8xf32>
    %67 = arith.truncf %66 : vector<8x8xf32> to vector<8x8xbf16>
    %c0_61 = arith.constant 0 : index
    %c2_62 = arith.constant 2 : index
    %c0_63 = arith.constant 0 : index
    %c0_64 = arith.constant 0 : index
    %68 = vector.load %arg7[%c0_61, %c2_62, %c0_63, %c0_64] : memref<1x4x8x8xbf16, #tpu.memory_space<vmem>>, vector<1x1x8x8xbf16>
    %69 = vector.shape_cast %68 : vector<1x1x8x8xbf16> to vector<8x8xbf16>
    %70 = vector.shape_cast %67 : vector<8x8xbf16> to vector<1x1x8x8xbf16>
    tpu.vector_store %arg7[%c0_61, %c2_62, %c0_63, %c0_64], %70 {strides = array<i32>} : memref<1x4x8x8xbf16, #tpu.memory_space<vmem>>, vector<1x1x8x8xbf16>,
    %c3 = arith.constant 3 : index
    %c0_65 = arith.constant 0 : index
    %c0_66 = arith.constant 0 : index
    %71 = vector.load %arg2[%c3, %c0_65, %c0_66] : memref<4x32x8xbf16, #tpu.memory_space<vmem>>, vector<1x32x8xbf16>
    %72 = vector.shape_cast %71 : vector<1x32x8xbf16> to vector<32x8xbf16>
    %cst_67 = arith.constant dense<0.000000e+00> : vector<8x8xf32>
    %73 = tpu.matmul %1, %72, %cst_67 {dimension_numbers = #tpu.dot_dimension_numbers<[1], [0], [0], [1], [0, 0, 1, 1], [], []>} : vector<8x32xbf16>, vector<32x8xbf16>, vector<8x8xf32> -> vector<8x8xf32>
    %c3_68 = arith.constant 3 : index
    %c0_69 = arith.constant 0 : index
    %c0_70 = arith.constant 0 : index
    %74 = vector.load %arg3[%c3_68, %c0_69, %c0_70] : memref<4x1x8xf32, #tpu.memory_space<vmem>>, vector<1x1x8xf32>
    %75 = vector.shape_cast %74 : vector<1x1x8xf32> to vector<1x8xf32>
    %76 = vector.broadcast %75 : vector<1x8xf32> to vector<8x8xf32>
    %77 = arith.addf %73, %76 : vector<8x8xf32>
    %78 = tpu.transpose %77, [1, 0] : vector<8x8xf32> -> vector<8x8xf32>
    %79 = arith.truncf %78 : vector<8x8xf32> to vector<8x8xbf16>
    %c0_71 = arith.constant 0 : index
    %c3_72 = arith.constant 3 : index
    %c0_73 = arith.constant 0 : index
    %c0_74 = arith.constant 0 : index
    %80 = vector.load %arg6[%c0_71, %c3_72, %c0_73, %c0_74] : memref<1x4x8x8xbf16, #tpu.memory_space<vmem>>, vector<1x1x8x8xbf16>
    %81 = vector.shape_cast %80 : vector<1x1x8x8xbf16> to vector<8x8xbf16>
    %82 = vector.shape_cast %79 : vector<8x8xbf16> to vector<1x1x8x8xbf16>
    tpu.vector_store %arg6[%c0_71, %c3_72, %c0_73, %c0_74], %82 {strides = array<i32>} : memref<1x4x8x8xbf16, #tpu.memory_space<vmem>>, vector<1x1x8x8xbf16>,
    %c3_75 = arith.constant 3 : index
    %c0_76 = arith.constant 0 : index
    %c0_77 = arith.constant 0 : index
    %83 = vector.load %arg4[%c3_75, %c0_76, %c0_77] : memref<4x32x8xbf16, #tpu.memory_space<vmem>>, vector<1x32x8xbf16>
    %84 = vector.shape_cast %83 : vector<1x32x8xbf16> to vector<32x8xbf16>
    %cst_78 = arith.constant dense<0.000000e+00> : vector<8x8xf32>
    %85 = tpu.matmul %1, %84, %cst_78 {dimension_numbers = #tpu.dot_dimension_numbers<[1], [0], [0], [1], [0, 0, 1, 1], [], []>} : vector<8x32xbf16>, vector<32x8xbf16>, vector<8x8xf32> -> vector<8x8xf32>
    %c3_79 = arith.constant 3 : index
    %c0_80 = arith.constant 0 : index
    %c0_81 = arith.constant 0 : index
    %86 = vector.load %arg5[%c3_79, %c0_80, %c0_81] : memref<4x1x8xf32, #tpu.memory_space<vmem>>, vector<1x1x8xf32>
    %87 = vector.shape_cast %86 : vector<1x1x8xf32> to vector<1x8xf32>
    %88 = vector.broadcast %87 : vector<1x8xf32> to vector<8x8xf32>
    %89 = arith.addf %85, %88 : vector<8x8xf32>
    %90 = arith.truncf %89 : vector<8x8xf32> to vector<8x8xbf16>
    %c0_82 = arith.constant 0 : index
    %c3_83 = arith.constant 3 : index
    %c0_84 = arith.constant 0 : index
    %c0_85 = arith.constant 0 : index
    %91 = vector.load %arg7[%c0_82, %c3_83, %c0_84, %c0_85] : memref<1x4x8x8xbf16, #tpu.memory_space<vmem>>, vector<1x1x8x8xbf16>
    %92 = vector.shape_cast %91 : vector<1x1x8x8xbf16> to vector<8x8xbf16>
    %93 = vector.shape_cast %90 : vector<8x8xbf16> to vector<1x1x8x8xbf16>
    tpu.vector_store %arg7[%c0_82, %c3_83, %c0_84, %c0_85], %93 {strides = array<i32>} : memref<1x4x8x8xbf16, #tpu.memory_space<vmem>>, vector<1x1x8x8xbf16>,
    return
  }
  func.func @transform_0(%arg0: i32) -> (i32, i32, i32) {
    %c0_i32 = arith.constant 0 : i32
    %c0_i32_0 = arith.constant 0 : i32
    %c0_i32_1 = arith.constant 0 : i32
    return %arg0, %c0_i32, %c0_i32_0 : i32, i32, i32
  }
  func.func @transform_1(%arg0: i32) -> (i32, i32, i32) {
    %c0_i32 = arith.constant 0 : i32
    %c0_i32_0 = arith.constant 0 : i32
    %c0_i32_1 = arith.constant 0 : i32
    %c0_i32_2 = arith.constant 0 : i32
    return %c0_i32, %c0_i32_0, %c0_i32_1 : i32, i32, i32
  }
  func.func @transform_2(%arg0: i32) -> (i32, i32, i32) {
    %c0_i32 = arith.constant 0 : i32
    %c0_i32_0 = arith.constant 0 : i32
    %c0_i32_1 = arith.constant 0 : i32
    %c0_i32_2 = arith.constant 0 : i32
    return %c0_i32, %c0_i32_0, %c0_i32_1 : i32, i32, i32
  }
  func.func @transform_3(%arg0: i32) -> (i32, i32, i32) {
    %c0_i32 = arith.constant 0 : i32
    %c0_i32_0 = arith.constant 0 : i32
    %c0_i32_1 = arith.constant 0 : i32
    %c0_i32_2 = arith.constant 0 : i32
    return %c0_i32, %c0_i32_0, %c0_i32_1 : i32, i32, i32
  }
  func.func @transform_4(%arg0: i32) -> (i32, i32, i32) {
    %c0_i32 = arith.constant 0 : i32
    %c0_i32_0 = arith.constant 0 : i32
    %c0_i32_1 = arith.constant 0 : i32
    %c0_i32_2 = arith.constant 0 : i32
    return %c0_i32, %c0_i32_0, %c0_i32_1 : i32, i32, i32
  }
  func.func @transform_5(%arg0: i32) -> (i32, i32, i32, i32) {
    %c0_i32 = arith.constant 0 : i32
    %c0_i32_0 = arith.constant 0 : i32
    %c0_i32_1 = arith.constant 0 : i32
    %c0_i32_2 = arith.constant 0 : i32
    return %arg0, %c0_i32, %c0_i32_0, %c0_i32_1 : i32, i32, i32, i32
  }
  func.func @transform_6(%arg0: i32) -> (i32, i32, i32, i32) {
    %c0_i32 = arith.constant 0 : i32
    %c0_i32_0 = arith.constant 0 : i32
    %c0_i32_1 = arith.constant 0 : i32
    %c0_i32_2 = arith.constant 0 : i32
    return %arg0, %c0_i32, %c0_i32_0, %c0_i32_1 : i32, i32, i32, i32
  }
}

</mosaic_0001>

<llo_original>
// kernel: tpu_custom_call.1
$region0: #{tpu_custom_call.1}
  #allocation0 [shape = 'u32[]', space=smem, size = 0x4, offset = 0x4, fixed_abs, tag = 'smem constant byte address 0x4 - core index']
  #allocation1 [shape = 'u32[144,128]{1,0:T(1,128)}', space=vmem, size = 0x12000, scoped, tag = 'internal scratch']
  %s0 = inlined_call_operand.hbm [shape: bf16[2,8,32], index: 0, kind: input, shape index: {}]
  %s1 = inlined_call_operand.hbm [shape: bf16[4,32,8], index: 1, kind: input, shape index: {}]
  %s2 = inlined_call_operand.hbm [shape: f32[4,1,8], index: 2, kind: input, shape index: {}]
  %s3 = inlined_call_operand.hbm [shape: bf16[4,32,8], index: 3, kind: input, shape index: {}]
  %s4 = inlined_call_operand.hbm [shape: f32[4,1,8], index: 4, kind: input, shape index: {}]
  %s5 = inlined_call_operand.hbm [shape: bf16[2,4,8,8], index: 5, kind: output, shape index: {0}]
  %s6 = inlined_call_operand.hbm [shape: bf16[2,4,8,8], index: 6, kind: output, shape index: {1}]
  %7 = xla_tuple %s5, %s6
  %s8 = sld [smem:[#allocation0]]
  $region81: #{tpu_custom_call.1} parent=0
    _
  %s10 = ssub.s32 1, %s8
  %s11 = scalar_select 0, %s10, %s8
  $region1: #{tpu_custom_call.1} parent=0
    #allocation2 [shape = 'u8[4096]{0}', space=vmem, size = 0x1000, scoped, tag = 'input window, operand 0']
    #allocation3 [shape = 's32[2]{0}', space=sflag, size = 0x8, scoped, tag = 'scoped memory for tpu_custom_call.1']
    #allocation4 [shape = 's32[2]{0}', space=sflag, size = 0x8, scoped, tag = 'scoped memory for tpu_custom_call.1']
    #allocation5 [shape = 'u8[32768]{0}', space=vmem, size = 0x8000, scoped, tag = 'input window, operand 1, single buffered']
    #allocation6 [shape = 's32[1]{0}', space=sflag, size = 0x4, scoped, tag = 'scoped memory for tpu_custom_call.1']
    #allocation7 [shape = 'u8[2048]{0}', space=vmem, size = 0x800, scoped, tag = 'input window, operand 2, single buffered']
    #allocation8 [shape = 'u8[32768]{0}', space=vmem, size = 0x8000, scoped, tag = 'input window, operand 3, single buffered']
    #allocation9 [shape = 's32[1]{0}', space=sflag, size = 0x4, scoped, tag = 'scoped memory for tpu_custom_call.1']
    #allocation10 [shape = 'u8[2048]{0}', space=vmem, size = 0x800, scoped, tag = 'input window, operand 4, single buffered']
    #allocation11 [shape = 'u8[16384]{0}', space=vmem, size = 0x4000, scoped, tag = 'output window, operand 0']
    #allocation12 [shape = 'u8[16384]{0}', space=vmem, size = 0x4000, scoped, tag = 'output window, operand 1']
    #allocation13 [shape = 's32[2]{0}', space=sflag, size = 0x8, scoped, tag = 'scoped memory for tpu_custom_call.1']
    %12 = vsyncpa [#allocation3], 0
    %s13 = scalar_lea.sflag [#allocation3], 1
    %14 = vsyncpa %s13, 0
    %15 = vsyncpa [#allocation6], 0
    %16 = vsyncpa [#allocation9], 0
    %17 = vsyncpa [#allocation4], 0
    %s18 = scalar_lea.sflag [#allocation4], 1
    %19 = vsyncpa %s18, 0
    %20 = vsyncpa [#allocation13], 0
    %s21 = scalar_lea.sflag [#allocation13], 1
    %22 = vsyncpa %s21, 0
    loop: start=0, step=1, limit=4
    $region2: #{tpu_custom_call.1} parent=1 // loop_pre_header
      _
    $region3: #{tpu_custom_call.1} parent=1 // loop_header
      %s24 = sphi 0, %s28
      %p25 = scmp.ge.s32.totalorder %s24, 4
      %s34 = sphi 0, %s36
      %s37 = sphi 0, %s34
      %s38 = sphi 0, %s37
      %s54 = sphi 0, %s38
      %s58 = sphi 0, %s58
      %s60 = sphi 0, %s58
      %s61 = sphi 0, %s60
      %s75 = sphi 0, %s61
      %s79 = sphi 0, %s79
      %s81 = sphi 0, %s79
      %s82 = sphi 0, %s81
      %s96 = sphi 0, %s82
      %s100 = sphi 0, %s100
      %s102 = sphi 0, %s100
      %s103 = sphi 0, %s102
      %s117 = sphi 0, %s103
      %s121 = sphi 0, %s121
      %s123 = sphi 0, %s121
      %s124 = sphi 0, %s123
      %s138 = sphi 0, %s124
      %s144 = sphi 0, %s146
      %s147 = sphi 0, %s144
      %s148 = sphi 0, %s147
      %s164 = sphi 0, %s148
      %s170 = sphi 0, %s172
      %s173 = sphi 0, %s170
      %s174 = sphi 0, %s173
      %s190 = sphi 0, %s174
    $region4: #{tpu_custom_call.1} parent=1 // loop_header_branch
      %27 = sbr.rel (%p25) target = $region8
    $region5: #{tpu_custom_call.1} parent=1 // loop_body
      %s29 = ssub.s32 %s24, 1
      %s30 = ssub.s32 %s24, 2
      %s31 = sadd.s32 %s24, 1
      %s32 = ssub.s32 %s24, %s31
      %p33 = scmp.eq.s32.totalorder %s32, 0
      %s35 = sadd.s32 %s34, 1
      %s36 = scalar_select %p33, %s34, %s35
      %p39 = pneg %p33
      %p40 = scmp.eq.s32.totalorder %s24, 1
      %p41 = por %p39, %p40
      %p42 = scmp.ne.s32.totalorder %s34, %s37
      %p43 = scmp.eq.s32.totalorder %s24, 0
      %p44 = por %p42, %p43
      %p45 = scmp.ne.s32.totalorder %s34, %s37
      %p46 = scmp.eq.s32.totalorder %s29, 1
      %p47 = por %p45, %p46
      %p48 = scmp.ne.s32.totalorder %s37, %s38
      %p49 = scmp.eq.s32.totalorder %s29, 0
      %p50 = por %p48, %p49
      %p51 = scmp.ne.s32.totalorder %s37, %s38
      %p52 = scmp.eq.s32.totalorder %s30, 1
      %p53 = por %p51, %p52
      %p55 = scmp.ne.s32.totalorder %s38, %s54
      %p56 = scmp.eq.s32.totalorder %s30, 0
      %p57 = por %p55, %p56
      %s59 = sadd.s32 %s58, 1
      %p62 = scmp.eq.s32.totalorder %s24, 1
      %p63 = scmp.ne.s32.totalorder %s58, %s60
      %p64 = scmp.eq.s32.totalorder %s24, 0
      %p65 = por %p63, %p64
      %p66 = scmp.ne.s32.totalorder %s58, %s60
      %p67 = scmp.eq.s32.totalorder %s29, 1
      %p68 = por %p66, %p67
      %p69 = scmp.ne.s32.totalorder %s60, %s61
      %p70 = scmp.eq.s32.totalorder %s29, 0
      %p71 = por %p69, %p70
      %p72 = scmp.ne.s32.totalorder %s60, %s61
      %p73 = scmp.eq.s32.totalorder %s30, 1
      %p74 = por %p72, %p73
      %p76 = scmp.ne.s32.totalorder %s61, %s75
      %p77 = scmp.eq.s32.totalorder %s30, 0
      %p78 = por %p76, %p77
      %s80 = sadd.s32 %s79, 1
      %p83 = scmp.eq.s32.totalorder %s24, 1
      %p84 = scmp.ne.s32.totalorder %s79, %s81
      %p85 = scmp.eq.s32.totalorder %s24, 0
      %p86 = por %p84, %p85
      %p87 = scmp.ne.s32.totalorder %s79, %s81
      %p88 = scmp.eq.s32.totalorder %s29, 1
      %p89 = por %p87, %p88
      %p90 = scmp.ne.s32.totalorder %s81, %s82
      %p91 = scmp.eq.s32.totalorder %s29, 0
      %p92 = por %p90, %p91
      %p93 = scmp.ne.s32.totalorder %s81, %s82
      %p94 = scmp.eq.s32.totalorder %s30, 1
      %p95 = por %p93, %p94
      %p97 = scmp.ne.s32.totalorder %s82, %s96
      %p98 = scmp.eq.s32.totalorder %s30, 0
      %p99 = por %p97, %p98
      %s101 = sadd.s32 %s100, 1
      %p104 = scmp.eq.s32.totalorder %s24, 1
      %p105 = scmp.ne.s32.totalorder %s100, %s102
      %p106 = scmp.eq.s32.totalorder %s24, 0
      %p107 = por %p105, %p106
      %p108 = scmp.ne.s32.totalorder %s100, %s102
      %p109 = scmp.eq.s32.totalorder %s29, 1
      %p110 = por %p108, %p109
      %p111 = scmp.ne.s32.totalorder %s102, %s103
      %p112 = scmp.eq.s32.totalorder %s29, 0
      %p113 = por %p111, %p112
      %p114 = scmp.ne.s32.totalorder %s102, %s103
      %p115 = scmp.eq.s32.totalorder %s30, 1
      %p116 = por %p114, %p115
      %p118 = scmp.ne.s32.totalorder %s103, %s117
      %p119 = scmp.eq.s32.totalorder %s30, 0
      %p120 = por %p118, %p119
      %s122 = sadd.s32 %s121, 1
      %p125 = scmp.eq.s32.totalorder %s24, 1
      %p126 = scmp.ne.s32.totalorder %s121, %s123
      %p127 = scmp.eq.s32.totalorder %s24, 0
      %p128 = por %p126, %p127
      %p129 = scmp.ne.s32.totalorder %s121, %s123
      %p130 = scmp.eq.s32.totalorder %s29, 1
      %p131 = por %p129, %p130
      %p132 = scmp.ne.s32.totalorder %s123, %s124
      %p133 = scmp.eq.s32.totalorder %s29, 0
      %p134 = por %p132, %p133
      %p135 = scmp.ne.s32.totalorder %s123, %s124
      %p136 = scmp.eq.s32.totalorder %s30, 1
      %p137 = por %p135, %p136
      %p139 = scmp.ne.s32.totalorder %s124, %s138
      %p140 = scmp.eq.s32.totalorder %s30, 0
      %p141 = por %p139, %p140
      %s142 = ssub.s32 %s24, %s31
      %p143 = scmp.eq.s32.totalorder %s142, 0
      %s145 = sadd.s32 %s144, 1
      %s146 = scalar_select %p143, %s144, %s145
      %p149 = pneg %p143
      %p150 = scmp.eq.s32.totalorder %s24, 1
      %p151 = por %p149, %p150
      %p152 = scmp.ne.s32.totalorder %s144, %s147
      %p153 = scmp.eq.s32.totalorder %s24, 0
      %p154 = por %p152, %p153
      %p155 = scmp.ne.s32.totalorder %s144, %s147
      %p156 = scmp.eq.s32.totalorder %s29, 1
      %p157 = por %p155, %p156
      %p158 = scmp.ne.s32.totalorder %s147, %s148
      %p159 = scmp.eq.s32.totalorder %s29, 0
      %p160 = por %p158, %p159
      %p161 = scmp.ne.s32.totalorder %s147, %s148
      %p162 = scmp.eq.s32.totalorder %s30, 1
      %p163 = por %p161, %p162
      %p165 = scmp.ne.s32.totalorder %s148, %s164
      %p166 = scmp.eq.s32.totalorder %s30, 0
      %p167 = por %p165, %p166
      %s168 = ssub.s32 %s24, %s31
      %p169 = scmp.eq.s32.totalorder %s168, 0
      %s171 = sadd.s32 %s170, 1
      %s172 = scalar_select %p169, %s170, %s171
      %p175 = pneg %p169
      %p176 = scmp.eq.s32.totalorder %s24, 1
      %p177 = por %p175, %p176
      %p178 = scmp.ne.s32.totalorder %s170, %s173
      %p179 = scmp.eq.s32.totalorder %s24, 0
      %p180 = por %p178, %p179
      %p181 = scmp.ne.s32.totalorder %s170, %s173
      %p182 = scmp.eq.s32.totalorder %s29, 1
      %p183 = por %p181, %p182
      %p184 = scmp.ne.s32.totalorder %s173, %s174
      %p185 = scmp.eq.s32.totalorder %s29, 0
      %p186 = por %p184, %p185
      %p187 = scmp.ne.s32.totalorder %s173, %s174
      %p188 = scmp.eq.s32.totalorder %s30, 1
      %p189 = por %p187, %p188
      %p191 = scmp.ne.s32.totalorder %s174, %s190
      %p192 = scmp.eq.s32.totalorder %s30, 0
      %p193 = por %p191, %p192
      %p194 = scmp.le.s32.totalorder 1, %s24
      %p195 = scmp.lt.s32.totalorder %s24, 3
      %p196 = pnand %p194, %p195
      %p197 = pneg %p196
      // Predicated region
      $region9: #{tpu_custom_call.1} parent=5 // pred_check
        _
      $region10: #{tpu_custom_call.1} parent=5 // pred_check_branch
        %199 = sbr.rel (%p196) target = $region12
      $region11: #{tpu_custom_call.1} parent=5 // pred_region
        %s200 = ssub.s32 %s24, 1
        // Predicated region
        $region13: #{tpu_custom_call.1} parent=11 // pred_check
          %p201 = pneg %p71
        $region14: #{tpu_custom_call.1} parent=11 // pred_check_branch
          %203 = sbr.rel (%p201) target = $region16
        $region15: #{tpu_custom_call.1} parent=11 // pred_region
          %s205 = ssub.s32 1024, 1024
          %206 = vsyncadd [#allocation6], %s205
          %s207 = sshll.u32 [#allocation5], 4
          %s208 = int_to_ptr.vmem [resolvable:$true] %s207
          %213 = dma.hbm_to_vmem [thread:$0]  %s1, 1024, %s208, [#allocation6], 64, 64, 4
        $region16: #{tpu_custom_call.1} parent=11 // pred_fallthru
          _
        // Predicated region
        $region17: #{tpu_custom_call.1} parent=11 // pred_check
          %p214 = pneg %p92
        $region18: #{tpu_custom_call.1} parent=11 // pred_check_branch
          %216 = sbr.rel (%p214) target = $region20
        $region19: #{tpu_custom_call.1} parent=11 // pred_region
          %s218 = ssub.s32 64, 64
          %219 = vsyncadd [#allocation6], %s218
          %s220 = sshll.u32 [#allocation7], 4
          %s221 = int_to_ptr.vmem [resolvable:$true] %s220
          %226 = dma.hbm_to_vmem [thread:$0]  %s2, 64, %s221, [#allocation6], 16, 16, 1
        $region20: #{tpu_custom_call.1} parent=11 // pred_fallthru
          _
        // Predicated region
        $region21: #{tpu_custom_call.1} parent=11 // pred_check
          %p227 = pneg %p113
        $region22: #{tpu_custom_call.1} parent=11 // pred_check_branch
          %229 = sbr.rel (%p227) target = $region24
        $region23: #{tpu_custom_call.1} parent=11 // pred_region
          %s231 = ssub.s32 1024, 1024
          %232 = vsyncadd [#allocation9], %s231
          %s233 = sshll.u32 [#allocation8], 4
          %s234 = int_to_ptr.vmem [resolvable:$true] %s233
          %239 = dma.hbm_to_vmem [thread:$0]  %s3, 1024, %s234, [#allocation9], 64, 64, 4
        $region24: #{tpu_custom_call.1} parent=11 // pred_fallthru
          _
        // Predicated region
        $region25: #{tpu_custom_call.1} parent=11 // pred_check
          %p240 = pneg %p134
        $region26: #{tpu_custom_call.1} parent=11 // pred_check_branch
          %242 = sbr.rel (%p240) target = $region28
        $region27: #{tpu_custom_call.1} parent=11 // pred_region
          %s244 = ssub.s32 64, 64
          %245 = vsyncadd [#allocation9], %s244
          %s246 = sshll.u32 [#allocation10], 4
          %s247 = int_to_ptr.vmem [resolvable:$true] %s246
          %252 = dma.hbm_to_vmem [thread:$0]  %s4, 64, %s247, [#allocation9], 16, 16, 1
        $region28: #{tpu_custom_call.1} parent=11 // pred_fallthru
          _
      $region12: #{tpu_custom_call.1} parent=5 // pred_fallthru
        _
      %p253 = scmp.lt.s32.totalorder %s24, 2
      // Predicated region
      $region29: #{tpu_custom_call.1} parent=5 // pred_check
        %p254 = pneg %p253
      $region30: #{tpu_custom_call.1} parent=5 // pred_check_branch
        %256 = sbr.rel (%p254) target = $region32
      $region31: #{tpu_custom_call.1} parent=5 // pred_region
        // Predicated region
        $region33: #{tpu_custom_call.1} parent=31 // pred_check
          %p257 = pneg %p44
        $region34: #{tpu_custom_call.1} parent=31 // pred_check_branch
          %259 = sbr.rel (%p257) target = $region36
        $region35: #{tpu_custom_call.1} parent=31 // pred_region
          %s260 = sand.u32 %s34, 1
          %s261 = scalar_lea.sflag [#allocation3], %s260
          %s262 = sand.u32 %s34, 1
          %s263 = smul.addr %s262, 4
          %s264 = scalar_lea.vmem [#allocation2], %s263
          %s266 = ssub.s32 64, 64
          %267 = vsyncadd %s261, %s266
          %s268 = smul.addr %s24, 64
          %s269 = scalar_lea.hbm %s0, %s268
          %s271 = sshll.u32 %s264, 4
          %s272 = int_to_ptr.vmem [resolvable:$true] %s271
          %274 = dma.hbm_to_vmem [thread:$0]  %s269, 64, %s272, %s261
        $region36: #{tpu_custom_call.1} parent=31 // pred_fallthru
          _
      $region32: #{tpu_custom_call.1} parent=5 // pred_fallthru
        _
      %p275 = scmp.le.s32.totalorder 1, %s24
      %p276 = scmp.lt.s32.totalorder %s24, 3
      %p277 = pnand %p275, %p276
      %p278 = pneg %p277
      // Predicated region
      $region37: #{tpu_custom_call.1} parent=5 // pred_check
        _
      $region38: #{tpu_custom_call.1} parent=5 // pred_check_branch
        %280 = sbr.rel (%p277) target = $region40
      $region39: #{tpu_custom_call.1} parent=5 // pred_region
        %s281 = ssub.s32 %s24, 1
        %s282 = sand.u32 %s37, 1
        %s283 = scalar_lea.sflag [#allocation3], %s282
        %s284 = sand.u32 %s37, 1
        %s285 = smul.addr %s284, 4
        %s286 = scalar_lea.vmem [#allocation2], %s285
        // Predicated region
        $region41: #{tpu_custom_call.1} parent=39 // pred_check
          %p287 = pneg %p50
        $region42: #{tpu_custom_call.1} parent=39 // pred_check_branch
          %289 = sbr.rel (%p287) target = $region44
        $region43: #{tpu_custom_call.1} parent=39 // pred_region
          %290 = dma.done %s283, 64
        $region44: #{tpu_custom_call.1} parent=39 // pred_fallthru
          _
        // Predicated region
        $region45: #{tpu_custom_call.1} parent=39 // pred_check
          %p291 = pneg %p71
        $region46: #{tpu_custom_call.1} parent=39 // pred_check_branch
          %293 = sbr.rel (%p291) target = $region48
        $region47: #{tpu_custom_call.1} parent=39 // pred_region
          %294 = dma.done [#allocation6], 1024
        $region48: #{tpu_custom_call.1} parent=39 // pred_fallthru
          _
        // Predicated region
        $region49: #{tpu_custom_call.1} parent=39 // pred_check
          %p295 = pneg %p92
        $region50: #{tpu_custom_call.1} parent=39 // pred_check_branch
          %297 = sbr.rel (%p295) target = $region52
        $region51: #{tpu_custom_call.1} parent=39 // pred_region
          %298 = dma.done [#allocation6], 64
        $region52: #{tpu_custom_call.1} parent=39 // pred_fallthru
          _
        // Predicated region
        $region53: #{tpu_custom_call.1} parent=39 // pred_check
          %p299 = pneg %p113
        $region54: #{tpu_custom_call.1} parent=39 // pred_check_branch
          %301 = sbr.rel (%p299) target = $region56
        $region55: #{tpu_custom_call.1} parent=39 // pred_region
          %302 = dma.done [#allocation9], 1024
        $region56: #{tpu_custom_call.1} parent=39 // pred_fallthru
          _
        // Predicated region
        $region57: #{tpu_custom_call.1} parent=39 // pred_check
          %p303 = pneg %p134
        $region58: #{tpu_custom_call.1} parent=39 // pred_check_branch
          %305 = sbr.rel (%p303) target = $region60
        $region59: #{tpu_custom_call.1} parent=39 // pred_region
          %306 = dma.done [#allocation9], 64
        $region60: #{tpu_custom_call.1} parent=39 // pred_fallthru
          _
        %s307 = sand.u32 %s37, 1
        %s308 = scalar_lea.sflag [#allocation3], %s307
        %s309 = sand.u32 %s37, 1
        %s310 = smul.addr %s309, 4
        %s311 = scalar_lea.vmem [#allocation2], %s310
        %p312 = pneg %p50
        %p313 = pneg %p47
        %p314 = pneg %p71
        %p315 = pneg %p68
        %p316 = pneg %p92
        %p317 = pneg %p89
        %p318 = pneg %p113
        %p319 = pneg %p110
        %p320 = pneg %p134
        %p321 = pneg %p131
        %p322 = pneg %p160
        %p323 = pneg %p157
        %s324 = sand.u32 %s147, 1
        %s325 = scalar_lea.sflag [#allocation4], %s324
        %s326 = sand.u32 %s147, 1
        %s327 = smul.addr %s326, 16
        %s328 = scalar_lea.vmem [#allocation11], %s327
        %p329 = pneg %p186
        %p330 = pneg %p183
        %s331 = sand.u32 %s173, 1
        %s332 = scalar_lea.sflag [#allocation13], %s331
        %s333 = sand.u32 %s173, 1
        %s334 = smul.addr %s333, 16
        %s335 = scalar_lea.vmem [#allocation12], %s334
        %v337 = vld [vmem:[%s286] sm:$0xf]
        %v338 = vld [vmem:[#allocation5] sm:$0xf]
        %v339 = vld [vmem:[#allocation5 + $0x4] sm:$0xf]
        %v340 = vld [vmem:[#allocation5 + $0x8] sm:$0xf]
        %v341 = vld [vmem:[#allocation5 + $0xc] sm:$0xf]
        %v342 = vld [vmem:[#allocation7] sm:$0x1]
        %v344 = vlaneseq
        %v345 = vshrl.u32 %v344, 7
        %v346 = vsub.s32 0, %v345
        %v347 = vrot.slane %v342, %v346
        %v353 = vunpack.c.l.b16 %v338
        %v354 = vunpack.c.l.b16 %v339
        %v355 = vunpack.c.l.b16 %v340
        %v356 = vunpack.c.l.b16 %v341
        %v357 = vpack.c.b16 %v354, %v353
        %v358 = vpack.c.b16 %v356, %v355
        %vm361 = vcmask 261120
        %v363 = vsel %vm361, %v337, 0
        %365 = vmatprep.subr.bf16.mxu0 0
        %366 = vmatpush1.bf16.msra.mxu0 %v357
        %367 = vmatprep.subr.bf16.mxu0 0
        %368 = vmatpush1.bf16.msra.mxu0 %v358
        %369 = vmatprep.subr.bf16.mxu0 0
        %370 = vmatpush1.bf16.msra.mxu0 0
        %371 = vmatprep.subr.bf16.mxu0 0
        %372 = vmatpush1.bf16.msra.mxu0 0
        %373 = vmatprep.subr.bf16.mxu0 0
        %374 = vmatpush1.bf16.msra.mxu0 0
        %375 = vmatprep.subr.bf16.mxu0 0
        %376 = vmatpush1.bf16.msra.mxu0 0
        %377 = vmatprep.subr.bf16.mxu0 0
        %378 = vmatpush1.bf16.msra.mxu0 0
        %379 = vmatprep.subr.bf16.mxu0 0
        %380 = vmatpush1.bf16.msra.mxu0 0
        %381 = vmatprep.subr.bf16.mxu0 0
        %382 = vmatpush1.bf16.msra.mxu0 0
        %383 = vmatprep.subr.bf16.mxu0 0
        %384 = vmatpush1.bf16.msra.mxu0 0
        %385 = vmatprep.subr.bf16.mxu0 0
        %386 = vmatpush1.bf16.msra.mxu0 0
        %387 = vmatprep.subr.bf16.mxu0 0
        %388 = vmatpush1.bf16.msra.mxu0 0
        %389 = vmatprep.subr.bf16.mxu0 0
        %390 = vmatpush1.bf16.msra.mxu0 0
        %391 = vmatprep.subr.bf16.mxu0 0
        %392 = vmatpush1.bf16.msra.mxu0 0
        %393 = vmatprep.subr.bf16.mxu0 0
        %394 = vmatpush1.bf16.msra.mxu0 0
        %395 = vmatprep.subr.bf16.mxu0 0
        %396 = vmatpush1.bf16.msra.mxu0 0
        %397 = vmatprep.mubr.bf16.mxu0 0
        %398 = vmatmul.mubr.bf16.gmra.mrb[0].mxu0 %v363
        %v399 = vpop.f32.mrb[0].mxu0
        %v400 = vadd.f32 %v347, %v399
        %v401 = vpop.f32.mrb[0].mxu0
        %v402 = vpop.f32.mrb[0].mxu0
        %v403 = vpop.f32.mrb[0].mxu0
        %404 = vdwg.mxu0
        %405 = vxpose.xlu0.b32.start [1/16] %v400, 128
        %406 = vxpose.xlu0.b32.cont [2/16] 0.0, 128
        %407 = vxpose.xlu0.b32.cont [3/16] 0.0, 128
        %408 = vxpose.xlu0.b32.cont [4/16] 0.0, 128
        %409 = vxpose.xlu0.b32.cont [5/16] 0.0, 128
        %410 = vxpose.xlu0.b32.cont [6/16] 0.0, 128
        %411 = vxpose.xlu0.b32.cont [7/16] 0.0, 128
        %412 = vxpose.xlu0.b32.cont [8/16] 0.0, 128
        %413 = vxpose.xlu0.b32.cont [9/16] 0.0, 128
        %414 = vxpose.xlu0.b32.cont [10/16] 0.0, 128
        %415 = vxpose.xlu0.b32.cont [11/16] 0.0, 128
        %416 = vxpose.xlu0.b32.cont [12/16] 0.0, 128
        %417 = vxpose.xlu0.b32.cont [13/16] 0.0, 128
        %418 = vxpose.xlu0.b32.cont [14/16] 0.0, 128
        %419 = vxpose.xlu0.b32.cont [15/16] 0.0, 128
        %420 = vxpose.xlu0.b32.end [16/16] 0.0, 128
        %v421 = vpop.trf.xlu0
        %v422 = vpop.trf.xlu0
        %v423 = vpop.trf.xlu0
        %v424 = vpop.trf.xlu0
        %v425 = vpop.trf.xlu0
        %v426 = vpop.trf.xlu0
        %v427 = vpop.trf.xlu0
        %v428 = vpop.trf.xlu0
        %v429 = vpop.trf.xlu0
        %v430 = vpop.trf.xlu0
        %v431 = vpop.trf.xlu0
        %v432 = vpop.trf.xlu0
        %v433 = vpop.trf.xlu0
        %v434 = vpop.trf.xlu0
        %v435 = vpop.trf.xlu0
        %v436 = vpop.trf.xlu0
        %v437 = vpack.c.bf16 %v421, %v421
        %vm438 = vcmask 60416
        %439 = vst.msk [vmem:[%s328] sm:$0xf] %vm438, %v437
        %v440 = vld [vmem:[#allocation8] sm:$0xf]
        %v441 = vld [vmem:[#allocation8 + $0x4] sm:$0xf]
        %v442 = vld [vmem:[#allocation8 + $0x8] sm:$0xf]
        %v443 = vld [vmem:[#allocation8 + $0xc] sm:$0xf]
        %v444 = vld [vmem:[#allocation10] sm:$0x1]
        %v446 = vlaneseq
        %v447 = vshrl.u32 %v446, 7
        %v448 = vsub.s32 0, %v447
        %v449 = vrot.slane %v444, %v448
        %v455 = vunpack.c.l.b16 %v440
        %v456 = vunpack.c.l.b16 %v441
        %v457 = vunpack.c.l.b16 %v442
        %v458 = vunpack.c.l.b16 %v443
        %v459 = vpack.c.b16 %v456, %v455
        %v460 = vpack.c.b16 %v458, %v457
        %463 = vmatprep.subr.bf16.mxu0 0
        %464 = vmatpush1.bf16.msra.mxu0 %v459
        %465 = vmatprep.subr.bf16.mxu0 0
        %466 = vmatpush1.bf16.msra.mxu0 %v460
        %467 = vmatprep.subr.bf16.mxu0 0
        %468 = vmatpush1.bf16.msra.mxu0 0
        %469 = vmatprep.subr.bf16.mxu0 0
        %470 = vmatpush1.bf16.msra.mxu0 0
        %471 = vmatprep.subr.bf16.mxu0 0
        %472 = vmatpush1.bf16.msra.mxu0 0
        %473 = vmatprep.subr.bf16.mxu0 0
        %474 = vmatpush1.bf16.msra.mxu0 0
        %475 = vmatprep.subr.bf16.mxu0 0
        %476 = vmatpush1.bf16.msra.mxu0 0
        %477 = vmatprep.subr.bf16.mxu0 0
        %478 = vmatpush1.bf16.msra.mxu0 0
        %479 = vmatprep.subr.bf16.mxu0 0
        %480 = vmatpush1.bf16.msra.mxu0 0
        %481 = vmatprep.subr.bf16.mxu0 0
        %482 = vmatpush1.bf16.msra.mxu0 0
        %483 = vmatprep.subr.bf16.mxu0 0
        %484 = vmatpush1.bf16.msra.mxu0 0
        %485 = vmatprep.subr.bf16.mxu0 0
        %486 = vmatpush1.bf16.msra.mxu0 0
        %487 = vmatprep.subr.bf16.mxu0 0
        %488 = vmatpush1.bf16.msra.mxu0 0
        %489 = vmatprep.subr.bf16.mxu0 0
        %490 = vmatpush1.bf16.msra.mxu0 0
        %491 = vmatprep.subr.bf16.mxu0 0
        %492 = vmatpush1.bf16.msra.mxu0 0
        %493 = vmatprep.subr.bf16.mxu0 0
        %494 = vmatpush1.bf16.msra.mxu0 0
        %495 = vmatprep.mubr.bf16.mxu0 0
        %496 = vmatmul.mubr.bf16.gmra.mrb[0].mxu0 %v363
        %v497 = vpop.f32.mrb[0].mxu0
        %v498 = vadd.f32 %v449, %v497
        %v499 = vpop.f32.mrb[0].mxu0
        %v500 = vpop.f32.mrb[0].mxu0
        %v501 = vpop.f32.mrb[0].mxu0
        %502 = vdwg.mxu0
        %v503 = vpack.c.bf16 %v498, %v498
        %504 = vst.msk [vmem:[%s335] sm:$0xf] %vm438, %v503
        %s505 = scalar_lea.vmem [#allocation5], 16
        %v506 = vld [vmem:[%s505] sm:$0xf]
        %v507 = vld [vmem:[%s505 + $0x4] sm:$0xf]
        %v508 = vld [vmem:[%s505 + $0x8] sm:$0xf]
        %v509 = vld [vmem:[%s505 + $0xc] sm:$0xf]
        %s510 = scalar_lea.vmem [#allocation7], 1
        %v511 = vld [vmem:[%s510] sm:$0x1]
        %v513 = vlaneseq
        %v514 = vshrl.u32 %v513, 7
        %v515 = vsub.s32 0, %v514
        %v516 = vrot.slane %v511, %v515
        %v522 = vunpack.c.l.b16 %v506
        %v523 = vunpack.c.l.b16 %v507
        %v524 = vunpack.c.l.b16 %v508
        %v525 = vunpack.c.l.b16 %v509
        %v526 = vpack.c.b16 %v523, %v522
        %v527 = vpack.c.b16 %v525, %v524
        %530 = vmatprep.subr.bf16.mxu0 0
        %531 = vmatpush1.bf16.msra.mxu0 %v526
        %532 = vmatprep.subr.bf16.mxu0 0
        %533 = vmatpush1.bf16.msra.mxu0 %v527
        %534 = vmatprep.subr.bf16.mxu0 0
        %535 = vmatpush1.bf16.msra.mxu0 0
        %536 = vmatprep.subr.bf16.mxu0 0
        %537 = vmatpush1.bf16.msra.mxu0 0
        %538 = vmatprep.subr.bf16.mxu0 0
        %539 = vmatpush1.bf16.msra.mxu0 0
        %540 = vmatprep.subr.bf16.mxu0 0
        %541 = vmatpush1.bf16.msra.mxu0 0
        %542 = vmatprep.subr.bf16.mxu0 0
        %543 = vmatpush1.bf16.msra.mxu0 0
        %544 = vmatprep.subr.bf16.mxu0 0
        %545 = vmatpush1.bf16.msra.mxu0 0
        %546 = vmatprep.subr.bf16.mxu0 0
        %547 = vmatpush1.bf16.msra.mxu0 0
        %548 = vmatprep.subr.bf16.mxu0 0
        %549 = vmatpush1.bf16.msra.mxu0 0
        %550 = vmatprep.subr.bf16.mxu0 0
        %551 = vmatpush1.bf16.msra.mxu0 0
        %552 = vmatprep.subr.bf16.mxu0 0
        %553 = vmatpush1.bf16.msra.mxu0 0
        %554 = vmatprep.subr.bf16.mxu0 0
        %555 = vmatpush1.bf16.msra.mxu0 0
        %556 = vmatprep.subr.bf16.mxu0 0
        %557 = vmatpush1.bf16.msra.mxu0 0
        %558 = vmatprep.subr.bf16.mxu0 0
        %559 = vmatpush1.bf16.msra.mxu0 0
        %560 = vmatprep.subr.bf16.mxu0 0
        %561 = vmatpush1.bf16.msra.mxu0 0
        %562 = vmatprep.mubr.bf16.mxu0 0
        %563 = vmatmul.mubr.bf16.gmra.mrb[0].mxu0 %v363
        %v564 = vpop.f32.mrb[0].mxu0
        %v565 = vadd.f32 %v516, %v564
        %v566 = vpop.f32.mrb[0].mxu0
        %v567 = vpop.f32.mrb[0].mxu0
        %v568 = vpop.f32.mrb[0].mxu0
        %569 = vdwg.mxu0
        %570 = vxpose.xlu0.b32.start [1/16] %v565, 128
        %571 = vxpose.xlu0.b32.cont [2/16] 0.0, 128
        %572 = vxpose.xlu0.b32.cont [3/16] 0.0, 128
        %573 = vxpose.xlu0.b32.cont [4/16] 0.0, 128
        %574 = vxpose.xlu0.b32.cont [5/16] 0.0, 128
        %575 = vxpose.xlu0.b32.cont [6/16] 0.0, 128
        %576 = vxpose.xlu0.b32.cont [7/16] 0.0, 128
        %577 = vxpose.xlu0.b32.cont [8/16] 0.0, 128
        %578 = vxpose.xlu0.b32.cont [9/16] 0.0, 128
        %579 = vxpose.xlu0.b32.cont [10/16] 0.0, 128
        %580 = vxpose.xlu0.b32.cont [11/16] 0.0, 128
        %581 = vxpose.xlu0.b32.cont [12/16] 0.0, 128
        %582 = vxpose.xlu0.b32.cont [13/16] 0.0, 128
        %583 = vxpose.xlu0.b32.cont [14/16] 0.0, 128
        %584 = vxpose.xlu0.b32.cont [15/16] 0.0, 128
        %585 = vxpose.xlu0.b32.end [16/16] 0.0, 128
        %v586 = vpop.trf.xlu0
        %v587 = vpop.trf.xlu0
        %v588 = vpop.trf.xlu0
        %v589 = vpop.trf.xlu0
        %v590 = vpop.trf.xlu0
        %v591 = vpop.trf.xlu0
        %v592 = vpop.trf.xlu0
        %v593 = vpop.trf.xlu0
        %v594 = vpop.trf.xlu0
        %v595 = vpop.trf.xlu0
        %v596 = vpop.trf.xlu0
        %v597 = vpop.trf.xlu0
        %v598 = vpop.trf.xlu0
        %v599 = vpop.trf.xlu0
        %v600 = vpop.trf.xlu0
        %v601 = vpop.trf.xlu0
        %v602 = vpack.c.bf16 %v586, %v586
        %s603 = scalar_lea.vmem %s328, 4 [#allocation11]
        %604 = vst.msk [vmem:[%s603] sm:$0xf] %vm438, %v602
        %s605 = scalar_lea.vmem [#allocation8], 16
        %v606 = vld [vmem:[%s605] sm:$0xf]
        %v607 = vld [vmem:[%s605 + $0x4] sm:$0xf]
        %v608 = vld [vmem:[%s605 + $0x8] sm:$0xf]
        %v609 = vld [vmem:[%s605 + $0xc] sm:$0xf]
        %s610 = scalar_lea.vmem [#allocation10], 1
        %v611 = vld [vmem:[%s610] sm:$0x1]
        %v613 = vlaneseq
        %v614 = vshrl.u32 %v613, 7
        %v615 = vsub.s32 0, %v614
        %v616 = vrot.slane %v611, %v615
        %v622 = vunpack.c.l.b16 %v606
        %v623 = vunpack.c.l.b16 %v607
        %v624 = vunpack.c.l.b16 %v608
        %v625 = vunpack.c.l.b16 %v609
        %v626 = vpack.c.b16 %v623, %v622
        %v627 = vpack.c.b16 %v625, %v624
        %630 = vmatprep.subr.bf16.mxu0 0
        %631 = vmatpush1.bf16.msra.mxu0 %v626
        %632 = vmatprep.subr.bf16.mxu0 0
        %633 = vmatpush1.bf16.msra.mxu0 %v627
        %634 = vmatprep.subr.bf16.mxu0 0
        %635 = vmatpush1.bf16.msra.mxu0 0
        %636 = vmatprep.subr.bf16.mxu0 0
        %637 = vmatpush1.bf16.msra.mxu0 0
        %638 = vmatprep.subr.bf16.mxu0 0
        %639 = vmatpush1.bf16.msra.mxu0 0
        %640 = vmatprep.subr.bf16.mxu0 0
        %641 = vmatpush1.bf16.msra.mxu0 0
        %642 = vmatprep.subr.bf16.mxu0 0
        %643 = vmatpush1.bf16.msra.mxu0 0
        %644 = vmatprep.subr.bf16.mxu0 0
        %645 = vmatpush1.bf16.msra.mxu0 0
        %646 = vmatprep.subr.bf16.mxu0 0
        %647 = vmatpush1.bf16.msra.mxu0 0
        %648 = vmatprep.subr.bf16.mxu0 0
        %649 = vmatpush1.bf16.msra.mxu0 0
        %650 = vmatprep.subr.bf16.mxu0 0
        %651 = vmatpush1.bf16.msra.mxu0 0
        %652 = vmatprep.subr.bf16.mxu0 0
        %653 = vmatpush1.bf16.msra.mxu0 0
        %654 = vmatprep.subr.bf16.mxu0 0
        %655 = vmatpush1.bf16.msra.mxu0 0
        %656 = vmatprep.subr.bf16.mxu0 0
        %657 = vmatpush1.bf16.msra.mxu0 0
        %658 = vmatprep.subr.bf16.mxu0 0
        %659 = vmatpush1.bf16.msra.mxu0 0
        %660 = vmatprep.subr.bf16.mxu0 0
        %661 = vmatpush1.bf16.msra.mxu0 0
        %662 = vmatprep.mubr.bf16.mxu0 0
        %663 = vmatmul.mubr.bf16.gmra.mrb[0].mxu0 %v363
        %v664 = vpop.f32.mrb[0].mxu0
        %v665 = vadd.f32 %v616, %v664
        %v666 = vpop.f32.mrb[0].mxu0
        %v667 = vpop.f32.mrb[0].mxu0
        %v668 = vpop.f32.mrb[0].mxu0
        %669 = vdwg.mxu0
        %v670 = vpack.c.bf16 %v665, %v665
        %s671 = scalar_lea.vmem %s335, 4 [#allocation12]
        %672 = vst.msk [vmem:[%s671] sm:$0xf] %vm438, %v670
        %s673 = scalar_lea.vmem [#allocation5], 32
        %v674 = vld [vmem:[%s673] sm:$0xf]
        %v675 = vld [vmem:[%s673 + $0x4] sm:$0xf]
        %v676 = vld [vmem:[%s673 + $0x8] sm:$0xf]
        %v677 = vld [vmem:[%s673 + $0xc] sm:$0xf]
        %s678 = scalar_lea.vmem [#allocation7], 2
        %v679 = vld [vmem:[%s678] sm:$0x1]
        %v681 = vlaneseq
        %v682 = vshrl.u32 %v681, 7
        %v683 = vsub.s32 0, %v682
        %v684 = vrot.slane %v679, %v683
        %v690 = vunpack.c.l.b16 %v674
        %v691 = vunpack.c.l.b16 %v675
        %v692 = vunpack.c.l.b16 %v676
        %v693 = vunpack.c.l.b16 %v677
        %v694 = vpack.c.b16 %v691, %v690
        %v695 = vpack.c.b16 %v693, %v692
        %698 = vmatprep.subr.bf16.mxu0 0
        %699 = vmatpush1.bf16.msra.mxu0 %v694
        %700 = vmatprep.subr.bf16.mxu0 0
        %701 = vmatpush1.bf16.msra.mxu0 %v695
        %702 = vmatprep.subr.bf16.mxu0 0
        %703 = vmatpush1.bf16.msra.mxu0 0
        %704 = vmatprep.subr.bf16.mxu0 0
        %705 = vmatpush1.bf16.msra.mxu0 0
        %706 = vmatprep.subr.bf16.mxu0 0
        %707 = vmatpush1.bf16.msra.mxu0 0
        %708 = vmatprep.subr.bf16.mxu0 0
        %709 = vmatpush1.bf16.msra.mxu0 0
        %710 = vmatprep.subr.bf16.mxu0 0
        %711 = vmatpush1.bf16.msra.mxu0 0
        %712 = vmatprep.subr.bf16.mxu0 0
        %713 = vmatpush1.bf16.msra.mxu0 0
        %714 = vmatprep.subr.bf16.mxu0 0
        %715 = vmatpush1.bf16.msra.mxu0 0
        %716 = vmatprep.subr.bf16.mxu0 0
        %717 = vmatpush1.bf16.msra.mxu0 0
        %718 = vmatprep.subr.bf16.mxu0 0
        %719 = vmatpush1.bf16.msra.mxu0 0
        %720 = vmatprep.subr.bf16.mxu0 0
        %721 = vmatpush1.bf16.msra.mxu0 0
        %722 = vmatprep.subr.bf16.mxu0 0
        %723 = vmatpush1.bf16.msra.mxu0 0
        %724 = vmatprep.subr.bf16.mxu0 0
        %725 = vmatpush1.bf16.msra.mxu0 0
        %726 = vmatprep.subr.bf16.mxu0 0
        %727 = vmatpush1.bf16.msra.mxu0 0
        %728 = vmatprep.subr.bf16.mxu0 0
        %729 = vmatpush1.bf16.msra.mxu0 0
        %730 = vmatprep.mubr.bf16.mxu0 0
        %731 = vmatmul.mubr.bf16.gmra.mrb[0].mxu0 %v363
        %v732 = vpop.f32.mrb[0].mxu0
        %v733 = vadd.f32 %v684, %v732
        %v734 = vpop.f32.mrb[0].mxu0
        %v735 = vpop.f32.mrb[0].mxu0
        %v736 = vpop.f32.mrb[0].mxu0
        %737 = vdwg.mxu0
        %738 = vxpose.xlu0.b32.start [1/16] %v733, 128
        %739 = vxpose.xlu0.b32.cont [2/16] 0.0, 128
        %740 = vxpose.xlu0.b32.cont [3/16] 0.0, 128
        %741 = vxpose.xlu0.b32.cont [4/16] 0.0, 128
        %742 = vxpose.xlu0.b32.cont [5/16] 0.0, 128
        %743 = vxpose.xlu0.b32.cont [6/16] 0.0, 128
        %744 = vxpose.xlu0.b32.cont [7/16] 0.0, 128
        %745 = vxpose.xlu0.b32.cont [8/16] 0.0, 128
        %746 = vxpose.xlu0.b32.cont [9/16] 0.0, 128
        %747 = vxpose.xlu0.b32.cont [10/16] 0.0, 128
        %748 = vxpose.xlu0.b32.cont [11/16] 0.0, 128
        %749 = vxpose.xlu0.b32.cont [12/16] 0.0, 128
        %750 = vxpose.xlu0.b32.cont [13/16] 0.0, 128
        %751 = vxpose.xlu0.b32.cont [14/16] 0.0, 128
        %752 = vxpose.xlu0.b32.cont [15/16] 0.0, 128
        %753 = vxpose.xlu0.b32.end [16/16] 0.0, 128
        %v754 = vpop.trf.xlu0
        %v755 = vpop.trf.xlu0
        %v756 = vpop.trf.xlu0
        %v757 = vpop.trf.xlu0
        %v758 = vpop.trf.xlu0
        %v759 = vpop.trf.xlu0
        %v760 = vpop.trf.xlu0
        %v761 = vpop.trf.xlu0
        %v762 = vpop.trf.xlu0
        %v763 = vpop.trf.xlu0
        %v764 = vpop.trf.xlu0
        %v765 = vpop.trf.xlu0
        %v766 = vpop.trf.xlu0
        %v767 = vpop.trf.xlu0
        %v768 = vpop.trf.xlu0
        %v769 = vpop.trf.xlu0
        %v770 = vpack.c.bf16 %v754, %v754
        %s771 = scalar_lea.vmem %s328, 8 [#allocation11]
        %772 = vst.msk [vmem:[%s771] sm:$0xf] %vm438, %v770
        %s773 = scalar_lea.vmem [#allocation8], 32
        %v774 = vld [vmem:[%s773] sm:$0xf]
        %v775 = vld [vmem:[%s773 + $0x4] sm:$0xf]
        %v776 = vld [vmem:[%s773 + $0x8] sm:$0xf]
        %v777 = vld [vmem:[%s773 + $0xc] sm:$0xf]
        %s778 = scalar_lea.vmem [#allocation10], 2
        %v779 = vld [vmem:[%s778] sm:$0x1]
        %v781 = vlaneseq
        %v782 = vshrl.u32 %v781, 7
        %v783 = vsub.s32 0, %v782
        %v784 = vrot.slane %v779, %v783
        %v790 = vunpack.c.l.b16 %v774
        %v791 = vunpack.c.l.b16 %v775
        %v792 = vunpack.c.l.b16 %v776
        %v793 = vunpack.c.l.b16 %v777
        %v794 = vpack.c.b16 %v791, %v790
        %v795 = vpack.c.b16 %v793, %v792
        %798 = vmatprep.subr.bf16.mxu0 0
        %799 = vmatpush1.bf16.msra.mxu0 %v794
        %800 = vmatprep.subr.bf16.mxu0 0
        %801 = vmatpush1.bf16.msra.mxu0 %v795
        %802 = vmatprep.subr.bf16.mxu0 0
        %803 = vmatpush1.bf16.msra.mxu0 0
        %804 = vmatprep.subr.bf16.mxu0 0
        %805 = vmatpush1.bf16.msra.mxu0 0
        %806 = vmatprep.subr.bf16.mxu0 0
        %807 = vmatpush1.bf16.msra.mxu0 0
        %808 = vmatprep.subr.bf16.mxu0 0
        %809 = vmatpush1.bf16.msra.mxu0 0
        %810 = vmatprep.subr.bf16.mxu0 0
        %811 = vmatpush1.bf16.msra.mxu0 0
        %812 = vmatprep.subr.bf16.mxu0 0
        %813 = vmatpush1.bf16.msra.mxu0 0
        %814 = vmatprep.subr.bf16.mxu0 0
        %815 = vmatpush1.bf16.msra.mxu0 0
        %816 = vmatprep.subr.bf16.mxu0 0
        %817 = vmatpush1.bf16.msra.mxu0 0
        %818 = vmatprep.subr.bf16.mxu0 0
        %819 = vmatpush1.bf16.msra.mxu0 0
        %820 = vmatprep.subr.bf16.mxu0 0
        %821 = vmatpush1.bf16.msra.mxu0 0
        %822 = vmatprep.subr.bf16.mxu0 0
        %823 = vmatpush1.bf16.msra.mxu0 0
        %824 = vmatprep.subr.bf16.mxu0 0
        %825 = vmatpush1.bf16.msra.mxu0 0
        %826 = vmatprep.subr.bf16.mxu0 0
        %827 = vmatpush1.bf16.msra.mxu0 0
        %828 = vmatprep.subr.bf16.mxu0 0
        %829 = vmatpush1.bf16.msra.mxu0 0
        %830 = vmatprep.mubr.bf16.mxu0 0
        %831 = vmatmul.mubr.bf16.gmra.mrb[0].mxu0 %v363
        %v832 = vpop.f32.mrb[0].mxu0
        %v833 = vadd.f32 %v784, %v832
        %v834 = vpop.f32.mrb[0].mxu0
        %v835 = vpop.f32.mrb[0].mxu0
        %v836 = vpop.f32.mrb[0].mxu0
        %837 = vdwg.mxu0
        %v838 = vpack.c.bf16 %v833, %v833
        %s839 = scalar_lea.vmem %s335, 8 [#allocation12]
        %840 = vst.msk [vmem:[%s839] sm:$0xf] %vm438, %v838
        %s841 = scalar_lea.vmem [#allocation5], 48
        %v842 = vld [vmem:[%s841] sm:$0xf]
        %v843 = vld [vmem:[%s841 + $0x4] sm:$0xf]
        %v844 = vld [vmem:[%s841 + $0x8] sm:$0xf]
        %v845 = vld [vmem:[%s841 + $0xc] sm:$0xf]
        %s846 = scalar_lea.vmem [#allocation7], 3
        %v847 = vld [vmem:[%s846] sm:$0x1]
        %v849 = vlaneseq
        %v850 = vshrl.u32 %v849, 7
        %v851 = vsub.s32 0, %v850
        %v852 = vrot.slane %v847, %v851
        %v858 = vunpack.c.l.b16 %v842
        %v859 = vunpack.c.l.b16 %v843
        %v860 = vunpack.c.l.b16 %v844
        %v861 = vunpack.c.l.b16 %v845
        %v862 = vpack.c.b16 %v859, %v858
        %v863 = vpack.c.b16 %v861, %v860
        %866 = vmatprep.subr.bf16.mxu0 0
        %867 = vmatpush1.bf16.msra.mxu0 %v862
        %868 = vmatprep.subr.bf16.mxu0 0
        %869 = vmatpush1.bf16.msra.mxu0 %v863
        %870 = vmatprep.subr.bf16.mxu0 0
        %871 = vmatpush1.bf16.msra.mxu0 0
        %872 = vmatprep.subr.bf16.mxu0 0
        %873 = vmatpush1.bf16.msra.mxu0 0
        %874 = vmatprep.subr.bf16.mxu0 0
        %875 = vmatpush1.bf16.msra.mxu0 0
        %876 = vmatprep.subr.bf16.mxu0 0
        %877 = vmatpush1.bf16.msra.mxu0 0
        %878 = vmatprep.subr.bf16.mxu0 0
        %879 = vmatpush1.bf16.msra.mxu0 0
        %880 = vmatprep.subr.bf16.mxu0 0
        %881 = vmatpush1.bf16.msra.mxu0 0
        %882 = vmatprep.subr.bf16.mxu0 0
        %883 = vmatpush1.bf16.msra.mxu0 0
        %884 = vmatprep.subr.bf16.mxu0 0
        %885 = vmatpush1.bf16.msra.mxu0 0
        %886 = vmatprep.subr.bf16.mxu0 0
        %887 = vmatpush1.bf16.msra.mxu0 0
        %888 = vmatprep.subr.bf16.mxu0 0
        %889 = vmatpush1.bf16.msra.mxu0 0
        %890 = vmatprep.subr.bf16.mxu0 0
        %891 = vmatpush1.bf16.msra.mxu0 0
        %892 = vmatprep.subr.bf16.mxu0 0
        %893 = vmatpush1.bf16.msra.mxu0 0
        %894 = vmatprep.subr.bf16.mxu0 0
        %895 = vmatpush1.bf16.msra.mxu0 0
        %896 = vmatprep.subr.bf16.mxu0 0
        %897 = vmatpush1.bf16.msra.mxu0 0
        %898 = vmatprep.mubr.bf16.mxu0 0
        %899 = vmatmul.mubr.bf16.gmra.mrb[0].mxu0 %v363
        %v900 = vpop.f32.mrb[0].mxu0
        %v901 = vadd.f32 %v852, %v900
        %v902 = vpop.f32.mrb[0].mxu0
        %v903 = vpop.f32.mrb[0].mxu0
        %v904 = vpop.f32.mrb[0].mxu0
        %905 = vdwg.mxu0
        %906 = vxpose.xlu0.b32.start [1/16] %v901, 128
        %907 = vxpose.xlu0.b32.cont [2/16] 0.0, 128
        %908 = vxpose.xlu0.b32.cont [3/16] 0.0, 128
        %909 = vxpose.xlu0.b32.cont [4/16] 0.0, 128
        %910 = vxpose.xlu0.b32.cont [5/16] 0.0, 128
        %911 = vxpose.xlu0.b32.cont [6/16] 0.0, 128
        %912 = vxpose.xlu0.b32.cont [7/16] 0.0, 128
        %913 = vxpose.xlu0.b32.cont [8/16] 0.0, 128
        %914 = vxpose.xlu0.b32.cont [9/16] 0.0, 128
        %915 = vxpose.xlu0.b32.cont [10/16] 0.0, 128
        %916 = vxpose.xlu0.b32.cont [11/16] 0.0, 128
        %917 = vxpose.xlu0.b32.cont [12/16] 0.0, 128
        %918 = vxpose.xlu0.b32.cont [13/16] 0.0, 128
        %919 = vxpose.xlu0.b32.cont [14/16] 0.0, 128
        %920 = vxpose.xlu0.b32.cont [15/16] 0.0, 128
        %921 = vxpose.xlu0.b32.end [16/16] 0.0, 128
        %v922 = vpop.trf.xlu0
        %v923 = vpop.trf.xlu0
        %v924 = vpop.trf.xlu0
        %v925 = vpop.trf.xlu0
        %v926 = vpop.trf.xlu0
        %v927 = vpop.trf.xlu0
        %v928 = vpop.trf.xlu0
        %v929 = vpop.trf.xlu0
        %v930 = vpop.trf.xlu0
        %v931 = vpop.trf.xlu0
        %v932 = vpop.trf.xlu0
        %v933 = vpop.trf.xlu0
        %v934 = vpop.trf.xlu0
        %v935 = vpop.trf.xlu0
        %v936 = vpop.trf.xlu0
        %v937 = vpop.trf.xlu0
        %v938 = vpack.c.bf16 %v922, %v922
        %s939 = scalar_lea.vmem %s328, 12 [#allocation11]
        %940 = vst.msk [vmem:[%s939] sm:$0xf] %vm438, %v938
        %s941 = scalar_lea.vmem [#allocation8], 48
        %v942 = vld [vmem:[%s941] sm:$0xf]
        %v943 = vld [vmem:[%s941 + $0x4] sm:$0xf]
        %v944 = vld [vmem:[%s941 + $0x8] sm:$0xf]
        %v945 = vld [vmem:[%s941 + $0xc] sm:$0xf]
        %s946 = scalar_lea.vmem [#allocation10], 3
        %v947 = vld [vmem:[%s946] sm:$0x1]
        %v949 = vlaneseq
        %v950 = vshrl.u32 %v949, 7
        %v951 = vsub.s32 0, %v950
        %v952 = vrot.slane %v947, %v951
        %v958 = vunpack.c.l.b16 %v942
        %v959 = vunpack.c.l.b16 %v943
        %v960 = vunpack.c.l.b16 %v944
        %v961 = vunpack.c.l.b16 %v945
        %v962 = vpack.c.b16 %v959, %v958
        %v963 = vpack.c.b16 %v961, %v960
        %966 = vmatprep.subr.bf16.mxu0 0
        %967 = vmatpush1.bf16.msra.mxu0 %v962
        %968 = vmatprep.subr.bf16.mxu0 0
        %969 = vmatpush1.bf16.msra.mxu0 %v963
        %970 = vmatprep.subr.bf16.mxu0 0
        %971 = vmatpush1.bf16.msra.mxu0 0
        %972 = vmatprep.subr.bf16.mxu0 0
        %973 = vmatpush1.bf16.msra.mxu0 0
        %974 = vmatprep.subr.bf16.mxu0 0
        %975 = vmatpush1.bf16.msra.mxu0 0
        %976 = vmatprep.subr.bf16.mxu0 0
        %977 = vmatpush1.bf16.msra.mxu0 0
        %978 = vmatprep.subr.bf16.mxu0 0
        %979 = vmatpush1.bf16.msra.mxu0 0
        %980 = vmatprep.subr.bf16.mxu0 0
        %981 = vmatpush1.bf16.msra.mxu0 0
        %982 = vmatprep.subr.bf16.mxu0 0
        %983 = vmatpush1.bf16.msra.mxu0 0
        %984 = vmatprep.subr.bf16.mxu0 0
        %985 = vmatpush1.bf16.msra.mxu0 0
        %986 = vmatprep.subr.bf16.mxu0 0
        %987 = vmatpush1.bf16.msra.mxu0 0
        %988 = vmatprep.subr.bf16.mxu0 0
        %989 = vmatpush1.bf16.msra.mxu0 0
        %990 = vmatprep.subr.bf16.mxu0 0
        %991 = vmatpush1.bf16.msra.mxu0 0
        %992 = vmatprep.subr.bf16.mxu0 0
        %993 = vmatpush1.bf16.msra.mxu0 0
        %994 = vmatprep.subr.bf16.mxu0 0
        %995 = vmatpush1.bf16.msra.mxu0 0
        %996 = vmatprep.subr.bf16.mxu0 0
        %997 = vmatpush1.bf16.msra.mxu0 0
        %998 = vmatprep.mubr.bf16.mxu0 0
        %999 = vmatmul.mubr.bf16.gmra.mrb[0].mxu0 %v363
        %v1000 = vpop.f32.mrb[0].mxu0
        %v1001 = vadd.f32 %v952, %v1000
        %v1002 = vpop.f32.mrb[0].mxu0
        %v1003 = vpop.f32.mrb[0].mxu0
        %v1004 = vpop.f32.mrb[0].mxu0
        %1005 = vdwg.mxu0
        %v1006 = vpack.c.bf16 %v1001, %v1001
        %s1007 = scalar_lea.vmem %s335, 12 [#allocation12]
        %1008 = vst.msk [vmem:[%s1007] sm:$0xf] %vm438, %v1006
        %s1009 = sand.u32 %s147, 1
        %s1010 = scalar_lea.sflag [#allocation4], %s1009
        %s1011 = sand.u32 %s147, 1
        %s1012 = smul.addr %s1011, 16
        %s1013 = scalar_lea.vmem [#allocation11], %s1012
        %s1014 = sand.u32 %s173, 1
        %s1015 = scalar_lea.sflag [#allocation13], %s1014
        %s1016 = sand.u32 %s173, 1
        %s1017 = smul.addr %s1016, 16
        %s1018 = scalar_lea.vmem [#allocation12], %s1017
        // Predicated region
        $region61: #{tpu_custom_call.1} parent=39 // pred_check
          %p1019 = pneg %p157
        $region62: #{tpu_custom_call.1} parent=39 // pred_check_branch
          %1021 = sbr.rel (%p1019) target = $region64
        $region63: #{tpu_custom_call.1} parent=39 // pred_region
          %s1023 = ssub.s32 256, 256
          %1024 = vsyncadd %s1010, %s1023
          %s1025 = smul.addr %s29, 4
          %s1026 = smul.addr %s1025, 64
          %s1027 = scalar_lea.hbm %s5, %s1026
          %s1028 = sshll.u32 %s1013, 4
          %s1029 = int_to_ptr.vmem [resolvable:$true] %s1028
          %1034 = dma.vmem_to_hbm [thread:$0]  %s1029, 256, %s1027, %s1010, 64, 64, 4
        $region64: #{tpu_custom_call.1} parent=39 // pred_fallthru
          _
        // Predicated region
        $region65: #{tpu_custom_call.1} parent=39 // pred_check
          %p1035 = pneg %p183
        $region66: #{tpu_custom_call.1} parent=39 // pred_check_branch
          %1037 = sbr.rel (%p1035) target = $region68
        $region67: #{tpu_custom_call.1} parent=39 // pred_region
          %s1039 = ssub.s32 256, 256
          %1040 = vsyncadd %s1015, %s1039
          %s1041 = smul.addr %s29, 4
          %s1042 = smul.addr %s1041, 64
          %s1043 = scalar_lea.hbm %s6, %s1042
          %s1044 = sshll.u32 %s1018, 4
          %s1045 = int_to_ptr.vmem [resolvable:$true] %s1044
          %1050 = dma.vmem_to_hbm [thread:$0]  %s1045, 256, %s1043, %s1015, 64, 64, 4
        $region68: #{tpu_custom_call.1} parent=39 // pred_fallthru
          _
      $region40: #{tpu_custom_call.1} parent=5 // pred_fallthru
        _
      %p1051 = scmp.le.s32.totalorder 2, %s24
      // Predicated region
      $region69: #{tpu_custom_call.1} parent=5 // pred_check
        %p1052 = pneg %p1051
      $region70: #{tpu_custom_call.1} parent=5 // pred_check_branch
        %1054 = sbr.rel (%p1052) target = $region72
      $region71: #{tpu_custom_call.1} parent=5 // pred_region
        %s1055 = ssub.s32 %s24, 2
        // Predicated region
        $region73: #{tpu_custom_call.1} parent=71 // pred_check
          %p1056 = pneg %p163
        $region74: #{tpu_custom_call.1} parent=71 // pred_check_branch
          %1058 = sbr.rel (%p1056) target = $region76
        $region75: #{tpu_custom_call.1} parent=71 // pred_region
          %s1059 = sand.u32 %s148, 1
          %s1060 = scalar_lea.sflag [#allocation4], %s1059
          %s1061 = sand.u32 %s148, 1
          %s1062 = smul.addr %s1061, 16
          %s1063 = scalar_lea.vmem [#allocation11], %s1062
          %1064 = dma.done %s1060, 256
        $region76: #{tpu_custom_call.1} parent=71 // pred_fallthru
          _
        // Predicated region
        $region77: #{tpu_custom_call.1} parent=71 // pred_check
          %p1065 = pneg %p189
        $region78: #{tpu_custom_call.1} parent=71 // pred_check_branch
          %1067 = sbr.rel (%p1065) target = $region80
        $region79: #{tpu_custom_call.1} parent=71 // pred_region
          %s1068 = sand.u32 %s174, 1
          %s1069 = scalar_lea.sflag [#allocation13], %s1068
          %s1070 = sand.u32 %s174, 1
          %s1071 = smul.addr %s1070, 16
          %s1072 = scalar_lea.vmem [#allocation12], %s1071
          %1073 = dma.done %s1069, 256
        $region80: #{tpu_custom_call.1} parent=71 // pred_fallthru
          _
      $region72: #{tpu_custom_call.1} parent=5 // pred_fallthru
        _
    $region6: #{tpu_custom_call.1} parent=1 // loop_footer
      %s28 = sadd.s32 1, %s24
    $region7: #{tpu_custom_call.1} parent=1 // loop_footer_branch
      %23 = sbr.rel target = $region3
    $region8: #{tpu_custom_call.1} parent=1 // loop_exit
      _
    %1074 = vsyncpa [#allocation3], 1
    %s1075 = scalar_lea.sflag [#allocation3], 1
    %1076 = vsyncpa %s1075, 1
    %1077 = vsyncpa [#allocation6], 1
    %1078 = vsyncpa [#allocation9], 1
    %1079 = vsyncpa [#allocation4], 1
    %s1080 = scalar_lea.sflag [#allocation4], 1
    %1081 = vsyncpa %s1080, 1
    %1082 = vsyncpa [#allocation13], 1
    %s1083 = scalar_lea.sflag [#allocation13], 1
    %1084 = vsyncpa %s1083, 1

// kernel: tpu_custom_call.1
$region0: #{tpu_custom_call.1}
  #allocation0 [shape = 'u32[]', space=smem, size = 0x4, offset = 0x4, fixed_abs, tag = 'smem constant byte address 0x4 - core index']
  #allocation1 [shape = 'u32[144,128]{1,0:T(1,128)}', space=vmem, size = 0x12000, scoped, tag = 'internal scratch']
  %s0 = inlined_call_operand.hbm [shape: bf16[2,8,32], index: 0, kind: input, shape index: {}]
  %s1 = inlined_call_operand.hbm [shape: bf16[4,32,8], index: 1, kind: input, shape index: {}]
  %s2 = inlined_call_operand.hbm [shape: f32[4,1,8], index: 2, kind: input, shape index: {}]
  %s3 = inlined_call_operand.hbm [shape: bf16[4,32,8], index: 3, kind: input, shape index: {}]
  %s4 = inlined_call_operand.hbm [shape: f32[4,1,8], index: 4, kind: input, shape index: {}]
  %s5 = inlined_call_operand.hbm [shape: bf16[2,4,8,8], index: 5, kind: output, shape index: {0}]
  %s6 = inlined_call_operand.hbm [shape: bf16[2,4,8,8], index: 6, kind: output, shape index: {1}]
  %7 = xla_tuple %s5, %s6
  %s8 = sld [smem:[#allocation0]]
  $region81: #{tpu_custom_call.1} parent=0
    _
  %s10 = ssub.s32 1, %s8
  %s11 = scalar_select 0, %s10, %s8
  $region1: #{tpu_custom_call.1} parent=0
    #allocation2 [shape = 'u8[4096]{0}', space=vmem, size = 0x1000, scoped, tag = 'input window, operand 0']
    #allocation3 [shape = 's32[2]{0}', space=sflag, size = 0x8, scoped, tag = 'scoped memory for tpu_custom_call.1']
    #allocation4 [shape = 's32[2]{0}', space=sflag, size = 0x8, scoped, tag = 'scoped memory for tpu_custom_call.1']
    #allocation5 [shape = 'u8[32768]{0}', space=vmem, size = 0x8000, scoped, tag = 'input window, operand 1, single buffered']
    #allocation6 [shape = 's32[1]{0}', space=sflag, size = 0x4, scoped, tag = 'scoped memory for tpu_custom_call.1']
    #allocation7 [shape = 'u8[2048]{0}', space=vmem, size = 0x800, scoped, tag = 'input window, operand 2, single buffered']
    #allocation8 [shape = 'u8[32768]{0}', space=vmem, size = 0x8000, scoped, tag = 'input window, operand 3, single buffered']
    #allocation9 [shape = 's32[1]{0}', space=sflag, size = 0x4, scoped, tag = 'scoped memory for tpu_custom_call.1']
    #allocation10 [shape = 'u8[2048]{0}', space=vmem, size = 0x800, scoped, tag = 'input window, operand 4, single buffered']
    #allocation11 [shape = 'u8[16384]{0}', space=vmem, size = 0x4000, scoped, tag = 'output window, operand 0']
    #allocation12 [shape = 'u8[16384]{0}', space=vmem, size = 0x4000, scoped, tag = 'output window, operand 1']
    #allocation13 [shape = 's32[2]{0}', space=sflag, size = 0x8, scoped, tag = 'scoped memory for tpu_custom_call.1']
    %12 = vsyncpa [#allocation3], 0
    %s13 = scalar_lea.sflag [#allocation3], 1
    %14 = vsyncpa %s13, 0
    %15 = vsyncpa [#allocation6], 0
    %16 = vsyncpa [#allocation9], 0
    %17 = vsyncpa [#allocation4], 0
    %s18 = scalar_lea.sflag [#allocation4], 1
    %19 = vsyncpa %s18, 0
    %20 = vsyncpa [#allocation13], 0
    %s21 = scalar_lea.sflag [#allocation13], 1
    %22 = vsyncpa %s21, 0
    loop: start=0, step=1, limit=4
    $region2: #{tpu_custom_call.1} parent=1 // loop_pre_header
      _
    $region3: #{tpu_custom_call.1} parent=1 // loop_header
      %s24 = sphi 0, %s28
      %p25 = scmp.ge.s32.totalorder %s24, 4
      %s34 = sphi 0, %s36
      %s37 = sphi 0, %s34
      %s38 = sphi 0, %s37
      %s54 = sphi 0, %s38
      %s58 = sphi 0, %s58
      %s60 = sphi 0, %s58
      %s61 = sphi 0, %s60
      %s75 = sphi 0, %s61
      %s79 = sphi 0, %s79
      %s81 = sphi 0, %s79
      %s82 = sphi 0, %s81
      %s96 = sphi 0, %s82
      %s100 = sphi 0, %s100
      %s102 = sphi 0, %s100
      %s103 = sphi 0, %s102
      %s117 = sphi 0, %s103
      %s121 = sphi 0, %s121
      %s123 = sphi 0, %s121
      %s124 = sphi 0, %s123
      %s138 = sphi 0, %s124
      %s144 = sphi 0, %s146
      %s147 = sphi 0, %s144
      %s148 = sphi 0, %s147
      %s164 = sphi 0, %s148
      %s170 = sphi 0, %s172
      %s173 = sphi 0, %s170
      %s174 = sphi 0, %s173
      %s190 = sphi 0, %s174
    $region4: #{tpu_custom_call.1} parent=1 // loop_header_branch
      %27 = sbr.rel (%p25) target = $region8
    $region5: #{tpu_custom_call.1} parent=1 // loop_body
      %s29 = ssub.s32 %s24, 1
      %s30 = ssub.s32 %s24, 2
      %s31 = sadd.s32 %s24, 1
      %s32 = ssub.s32 %s24, %s31
      %p33 = scmp.eq.s32.totalorder %s32, 0
      %s35 = sadd.s32 %s34, 1
      %s36 = scalar_select %p33, %s34, %s35
      %p39 = pneg %p33
      %p40 = scmp.eq.s32.totalorder %s24, 1
      %p41 = por %p39, %p40
      %p42 = scmp.ne.s32.totalorder %s34, %s37
      %p43 = scmp.eq.s32.totalorder %s24, 0
      %p44 = por %p42, %p43
      %p45 = scmp.ne.s32.totalorder %s34, %s37
      %p46 = scmp.eq.s32.totalorder %s29, 1
      %p47 = por %p45, %p46
      %p48 = scmp.ne.s32.totalorder %s37, %s38
      %p49 = scmp.eq.s32.totalorder %s29, 0
      %p50 = por %p48, %p49
      %p51 = scmp.ne.s32.totalorder %s37, %s38
      %p52 = scmp.eq.s32.totalorder %s30, 1
      %p53 = por %p51, %p52
      %p55 = scmp.ne.s32.totalorder %s38, %s54
      %p56 = scmp.eq.s32.totalorder %s30, 0
      %p57 = por %p55, %p56
      %s59 = sadd.s32 %s58, 1
      %p62 = scmp.eq.s32.totalorder %s24, 1
      %p63 = scmp.ne.s32.totalorder %s58, %s60
      %p64 = scmp.eq.s32.totalorder %s24, 0
      %p65 = por %p63, %p64
      %p66 = scmp.ne.s32.totalorder %s58, %s60
      %p67 = scmp.eq.s32.totalorder %s29, 1
      %p68 = por %p66, %p67
      %p69 = scmp.ne.s32.totalorder %s60, %s61
      %p70 = scmp.eq.s32.totalorder %s29, 0
      %p71 = por %p69, %p70
      %p72 = scmp.ne.s32.totalorder %s60, %s61
      %p73 = scmp.eq.s32.totalorder %s30, 1
      %p74 = por %p72, %p73
      %p76 = scmp.ne.s32.totalorder %s61, %s75
      %p77 = scmp.eq.s32.totalorder %s30, 0
      %p78 = por %p76, %p77
      %s80 = sadd.s32 %s79, 1
      %p83 = scmp.eq.s32.totalorder %s24, 1
      %p84 = scmp.ne.s32.totalorder %s79, %s81
      %p85 = scmp.eq.s32.totalorder %s24, 0
      %p86 = por %p84, %p85
      %p87 = scmp.ne.s32.totalorder %s79, %s81
      %p88 = scmp.eq.s32.totalorder %s29, 1
      %p89 = por %p87, %p88
      %p90 = scmp.ne.s32.totalorder %s81, %s82
      %p91 = scmp.eq.s32.totalorder %s29, 0
      %p92 = por %p90, %p91
      %p93 = scmp.ne.s32.totalorder %s81, %s82
      %p94 = scmp.eq.s32.totalorder %s30, 1
      %p95 = por %p93, %p94
      %p97 = scmp.ne.s32.totalorder %s82, %s96
      %p98 = scmp.eq.s32.totalorder %s30, 0
      %p99 = por %p97, %p98
      %s101 = sadd.s32 %s100, 1
      %p104 = scmp.eq.s32.totalorder %s24, 1
      %p105 = scmp.ne.s32.totalorder %s100, %s102
      %p106 = scmp.eq.s32.totalorder %s24, 0
      %p107 = por %p105, %p106
      %p108 = scmp.ne.s32.totalorder %s100, %s102
      %p109 = scmp.eq.s32.totalorder %s29, 1
      %p110 = por %p108, %p109
      %p111 = scmp.ne.s32.totalorder %s102, %s103
      %p112 = scmp.eq.s32.totalorder %s29, 0
      %p113 = por %p111, %p112
      %p114 = scmp.ne.s32.totalorder %s102, %s103
      %p115 = scmp.eq.s32.totalorder %s30, 1
      %p116 = por %p114, %p115
      %p118 = scmp.ne.s32.totalorder %s103, %s117
      %p119 = scmp.eq.s32.totalorder %s30, 0
      %p120 = por %p118, %p119
      %s122 = sadd.s32 %s121, 1
      %p125 = scmp.eq.s32.totalorder %s24, 1
      %p126 = scmp.ne.s32.totalorder %s121, %s123
      %p127 = scmp.eq.s32.totalorder %s24, 0
      %p128 = por %p126, %p127
      %p129 = scmp.ne.s32.totalorder %s121, %s123
      %p130 = scmp.eq.s32.totalorder %s29, 1
      %p131 = por %p129, %p130
      %p132 = scmp.ne.s32.totalorder %s123, %s124
      %p133 = scmp.eq.s32.totalorder %s29, 0
      %p134 = por %p132, %p133
      %p135 = scmp.ne.s32.totalorder %s123, %s124
      %p136 = scmp.eq.s32.totalorder %s30, 1
      %p137 = por %p135, %p136
      %p139 = scmp.ne.s32.totalorder %s124, %s138
      %p140 = scmp.eq.s32.totalorder %s30, 0
      %p141 = por %p139, %p140
      %s142 = ssub.s32 %s24, %s31
      %p143 = scmp.eq.s32.totalorder %s142, 0
      %s145 = sadd.s32 %s144, 1
      %s146 = scalar_select %p143, %s144, %s145
      %p149 = pneg %p143
      %p150 = scmp.eq.s32.totalorder %s24, 1
      %p151 = por %p149, %p150
      %p152 = scmp.ne.s32.totalorder %s144, %s147
      %p153 = scmp.eq.s32.totalorder %s24, 0
      %p154 = por %p152, %p153
      %p155 = scmp.ne.s32.totalorder %s144, %s147
      %p156 = scmp.eq.s32.totalorder %s29, 1
      %p157 = por %p155, %p156
      %p158 = scmp.ne.s32.totalorder %s147, %s148
      %p159 = scmp.eq.s32.totalorder %s29, 0
      %p160 = por %p158, %p159
      %p161 = scmp.ne.s32.totalorder %s147, %s148
      %p162 = scmp.eq.s32.totalorder %s30, 1
      %p163 = por %p161, %p162
      %p165 = scmp.ne.s32.totalorder %s148, %s164
      %p166 = scmp.eq.s32.totalorder %s30, 0
      %p167 = por %p165, %p166
      %s168 = ssub.s32 %s24, %s31
      %p169 = scmp.eq.s32.totalorder %s168, 0
      %s171 = sadd.s32 %s170, 1
      %s172 = scalar_select %p169, %s170, %s171
      %p175 = pneg %p169
      %p176 = scmp.eq.s32.totalorder %s24, 1
      %p177 = por %p175, %p176
      %p178 = scmp.ne.s32.totalorder %s170, %s173
      %p179 = scmp.eq.s32.totalorder %s24, 0
      %p180 = por %p178, %p179
      %p181 = scmp.ne.s32.totalorder %s170, %s173
      %p182 = scmp.eq.s32.totalorder %s29, 1
      %p183 = por %p181, %p182
      %p184 = scmp.ne.s32.totalorder %s173, %s174
      %p185 = scmp.eq.s32.totalorder %s29, 0
      %p186 = por %p184, %p185
      %p187 = scmp.ne.s32.totalorder %s173, %s174
      %p188 = scmp.eq.s32.totalorder %s30, 1
      %p189 = por %p187, %p188
      %p191 = scmp.ne.s32.totalorder %s174, %s190
      %p192 = scmp.eq.s32.totalorder %s30, 0
      %p193 = por %p191, %p192
      %p194 = scmp.le.s32.totalorder 1, %s24
      %p195 = scmp.lt.s32.totalorder %s24, 3
      %p196 = pnand %p194, %p195
      %p197 = pneg %p196
      // Predicated region
      $region9: #{tpu_custom_call.1} parent=5 // pred_check
        _
      $region10: #{tpu_custom_call.1} parent=5 // pred_check_branch
        %199 = sbr.rel (%p196) target = $region12
      $region11: #{tpu_custom_call.1} parent=5 // pred_region
        %s200 = ssub.s32 %s24, 1
        // Predicated region
        $region13: #{tpu_custom_call.1} parent=11 // pred_check
          %p201 = pneg %p71
        $region14: #{tpu_custom_call.1} parent=11 // pred_check_branch
          %203 = sbr.rel (%p201) target = $region16
        $region15: #{tpu_custom_call.1} parent=11 // pred_region
          %s205 = ssub.s32 1024, 1024
          %206 = vsyncadd [#allocation6], %s205
          %s207 = sshll.u32 [#allocation5], 4
          %s208 = int_to_ptr.vmem [resolvable:$true] %s207
          %213 = dma.hbm_to_vmem [thread:$0]  %s1, 1024, %s208, [#allocation6], 64, 64, 4
        $region16: #{tpu_custom_call.1} parent=11 // pred_fallthru
          _
        // Predicated region
        $region17: #{tpu_custom_call.1} parent=11 // pred_check
          %p214 = pneg %p92
        $region18: #{tpu_custom_call.1} parent=11 // pred_check_branch
          %216 = sbr.rel (%p214) target = $region20
        $region19: #{tpu_custom_call.1} parent=11 // pred_region
          %s218 = ssub.s32 64, 64
          %219 = vsyncadd [#allocation6], %s218
          %s220 = sshll.u32 [#allocation7], 4
          %s221 = int_to_ptr.vmem [resolvable:$true] %s220
          %226 = dma.hbm_to_vmem [thread:$0]  %s2, 64, %s221, [#allocation6], 16, 16, 1
        $region20: #{tpu_custom_call.1} parent=11 // pred_fallthru
          _
        // Predicated region
        $region21: #{tpu_custom_call.1} parent=11 // pred_check
          %p227 = pneg %p113
        $region22: #{tpu_custom_call.1} parent=11 // pred_check_branch
          %229 = sbr.rel (%p227) target = $region24
        $region23: #{tpu_custom_call.1} parent=11 // pred_region
          %s231 = ssub.s32 1024, 1024
          %232 = vsyncadd [#allocation9], %s231
          %s233 = sshll.u32 [#allocation8], 4
          %s234 = int_to_ptr.vmem [resolvable:$true] %s233
          %239 = dma.hbm_to_vmem [thread:$0]  %s3, 1024, %s234, [#allocation9], 64, 64, 4
        $region24: #{tpu_custom_call.1} parent=11 // pred_fallthru
          _
        // Predicated region
        $region25: #{tpu_custom_call.1} parent=11 // pred_check
          %p240 = pneg %p134
        $region26: #{tpu_custom_call.1} parent=11 // pred_check_branch
          %242 = sbr.rel (%p240) target = $region28
        $region27: #{tpu_custom_call.1} parent=11 // pred_region
          %s244 = ssub.s32 64, 64
          %245 = vsyncadd [#allocation9], %s244
          %s246 = sshll.u32 [#allocation10], 4
          %s247 = int_to_ptr.vmem [resolvable:$true] %s246
          %252 = dma.hbm_to_vmem [thread:$0]  %s4, 64, %s247, [#allocation9], 16, 16, 1
        $region28: #{tpu_custom_call.1} parent=11 // pred_fallthru
          _
      $region12: #{tpu_custom_call.1} parent=5 // pred_fallthru
        _
      %p253 = scmp.lt.s32.totalorder %s24, 2
      // Predicated region
      $region29: #{tpu_custom_call.1} parent=5 // pred_check
        %p254 = pneg %p253
      $region30: #{tpu_custom_call.1} parent=5 // pred_check_branch
        %256 = sbr.rel (%p254) target = $region32
      $region31: #{tpu_custom_call.1} parent=5 // pred_region
        // Predicated region
        $region33: #{tpu_custom_call.1} parent=31 // pred_check
          %p257 = pneg %p44
        $region34: #{tpu_custom_call.1} parent=31 // pred_check_branch
          %259 = sbr.rel (%p257) target = $region36
        $region35: #{tpu_custom_call.1} parent=31 // pred_region
          %s260 = sand.u32 %s34, 1
          %s261 = scalar_lea.sflag [#allocation3], %s260
          %s262 = sand.u32 %s34, 1
          %s263 = smul.addr %s262, 4
          %s264 = scalar_lea.vmem [#allocation2], %s263
          %s266 = ssub.s32 64, 64
          %267 = vsyncadd %s261, %s266
          %s268 = smul.addr %s24, 64
          %s269 = scalar_lea.hbm %s0, %s268
          %s271 = sshll.u32 %s264, 4
          %s272 = int_to_ptr.vmem [resolvable:$true] %s271
          %274 = dma.hbm_to_vmem [thread:$0]  %s269, 64, %s272, %s261
        $region36: #{tpu_custom_call.1} parent=31 // pred_fallthru
          _
      $region32: #{tpu_custom_call.1} parent=5 // pred_fallthru
        _
      %p275 = scmp.le.s32.totalorder 1, %s24
      %p276 = scmp.lt.s32.totalorder %s24, 3
      %p277 = pnand %p275, %p276
      %p278 = pneg %p277
      // Predicated region
      $region37: #{tpu_custom_call.1} parent=5 // pred_check
        _
      $region38: #{tpu_custom_call.1} parent=5 // pred_check_branch
        %280 = sbr.rel (%p277) target = $region40
      $region39: #{tpu_custom_call.1} parent=5 // pred_region
        %s281 = ssub.s32 %s24, 1
        %s282 = sand.u32 %s37, 1
        %s283 = scalar_lea.sflag [#allocation3], %s282
        %s284 = sand.u32 %s37, 1
        %s285 = smul.addr %s284, 4
        %s286 = scalar_lea.vmem [#allocation2], %s285
        // Predicated region
        $region41: #{tpu_custom_call.1} parent=39 // pred_check
          %p287 = pneg %p50
        $region42: #{tpu_custom_call.1} parent=39 // pred_check_branch
          %289 = sbr.rel (%p287) target = $region44
        $region43: #{tpu_custom_call.1} parent=39 // pred_region
          %290 = dma.done %s283, 64
        $region44: #{tpu_custom_call.1} parent=39 // pred_fallthru
          _
        // Predicated region
        $region45: #{tpu_custom_call.1} parent=39 // pred_check
          %p291 = pneg %p71
        $region46: #{tpu_custom_call.1} parent=39 // pred_check_branch
          %293 = sbr.rel (%p291) target = $region48
        $region47: #{tpu_custom_call.1} parent=39 // pred_region
          %294 = dma.done [#allocation6], 1024
        $region48: #{tpu_custom_call.1} parent=39 // pred_fallthru
          _
        // Predicated region
        $region49: #{tpu_custom_call.1} parent=39 // pred_check
          %p295 = pneg %p92
        $region50: #{tpu_custom_call.1} parent=39 // pred_check_branch
          %297 = sbr.rel (%p295) target = $region52
        $region51: #{tpu_custom_call.1} parent=39 // pred_region
          %298 = dma.done [#allocation6], 64
        $region52: #{tpu_custom_call.1} parent=39 // pred_fallthru
          _
        // Predicated region
        $region53: #{tpu_custom_call.1} parent=39 // pred_check
          %p299 = pneg %p113
        $region54: #{tpu_custom_call.1} parent=39 // pred_check_branch
          %301 = sbr.rel (%p299) target = $region56
        $region55: #{tpu_custom_call.1} parent=39 // pred_region
          %302 = dma.done [#allocation9], 1024
        $region56: #{tpu_custom_call.1} parent=39 // pred_fallthru
          _
        // Predicated region
        $region57: #{tpu_custom_call.1} parent=39 // pred_check
          %p303 = pneg %p134
        $region58: #{tpu_custom_call.1} parent=39 // pred_check_branch
          %305 = sbr.rel (%p303) target = $region60
        $region59: #{tpu_custom_call.1} parent=39 // pred_region
          %306 = dma.done [#allocation9], 64
        $region60: #{tpu_custom_call.1} parent=39 // pred_fallthru
          _
        %s307 = sand.u32 %s37, 1
        %s308 = scalar_lea.sflag [#allocation3], %s307
        %s309 = sand.u32 %s37, 1
        %s310 = smul.addr %s309, 4
        %s311 = scalar_lea.vmem [#allocation2], %s310
        %p312 = pneg %p50
        %p313 = pneg %p47
        %p314 = pneg %p71
        %p315 = pneg %p68
        %p316 = pneg %p92
        %p317 = pneg %p89
        %p318 = pneg %p113
        %p319 = pneg %p110
        %p320 = pneg %p134
        %p321 = pneg %p131
        %p322 = pneg %p160
        %p323 = pneg %p157
        %s324 = sand.u32 %s147, 1
        %s325 = scalar_lea.sflag [#allocation4], %s324
        %s326 = sand.u32 %s147, 1
        %s327 = smul.addr %s326, 16
        %s328 = scalar_lea.vmem [#allocation11], %s327
        %p329 = pneg %p186
        %p330 = pneg %p183
        %s331 = sand.u32 %s173, 1
        %s332 = scalar_lea.sflag [#allocation13], %s331
        %s333 = sand.u32 %s173, 1
        %s334 = smul.addr %s333, 16
        %s335 = scalar_lea.vmem [#allocation12], %s334
        %v337 = vld [vmem:[%s286] sm:$0xf]
        %v338 = vld [vmem:[#allocation5] sm:$0xf]
        %v339 = vld [vmem:[#allocation5 + $0x4] sm:$0xf]
        %v340 = vld [vmem:[#allocation5 + $0x8] sm:$0xf]
        %v341 = vld [vmem:[#allocation5 + $0xc] sm:$0xf]
        %v342 = vld [vmem:[#allocation7] sm:$0x1]
        %v344 = vlaneseq
        %v345 = vshrl.u32 %v344, 7
        %v346 = vsub.s32 0, %v345
        %v347 = vrot.slane %v342, %v346
        %v353 = vunpack.c.l.b16 %v338
        %v354 = vunpack.c.l.b16 %v339
        %v355 = vunpack.c.l.b16 %v340
        %v356 = vunpack.c.l.b16 %v341
        %v357 = vpack.c.b16 %v354, %v353
        %v358 = vpack.c.b16 %v356, %v355
        %vm361 = vcmask 261120
        %v363 = vsel %vm361, %v337, 0
        %365 = vmatprep.subr.bf16.mxu0 0
        %366 = vmatpush1.bf16.msra.mxu0 %v357
        %367 = vmatprep.subr.bf16.mxu0 0
        %368 = vmatpush1.bf16.msra.mxu0 %v358
        %369 = vmatprep.subr.bf16.mxu0 0
        %370 = vmatpush1.bf16.msra.mxu0 0
        %371 = vmatprep.subr.bf16.mxu0 0
        %372 = vmatpush1.bf16.msra.mxu0 0
        %373 = vmatprep.subr.bf16.mxu0 0
        %374 = vmatpush1.bf16.msra.mxu0 0
        %375 = vmatprep.subr.bf16.mxu0 0
        %376 = vmatpush1.bf16.msra.mxu0 0
        %377 = vmatprep.subr.bf16.mxu0 0
        %378 = vmatpush1.bf16.msra.mxu0 0
        %379 = vmatprep.subr.bf16.mxu0 0
        %380 = vmatpush1.bf16.msra.mxu0 0
        %381 = vmatprep.subr.bf16.mxu0 0
        %382 = vmatpush1.bf16.msra.mxu0 0
        %383 = vmatprep.subr.bf16.mxu0 0
        %384 = vmatpush1.bf16.msra.mxu0 0
        %385 = vmatprep.subr.bf16.mxu0 0
        %386 = vmatpush1.bf16.msra.mxu0 0
        %387 = vmatprep.subr.bf16.mxu0 0
        %388 = vmatpush1.bf16.msra.mxu0 0
        %389 = vmatprep.subr.bf16.mxu0 0
        %390 = vmatpush1.bf16.msra.mxu0 0
        %391 = vmatprep.subr.bf16.mxu0 0
        %392 = vmatpush1.bf16.msra.mxu0 0
        %393 = vmatprep.subr.bf16.mxu0 0
        %394 = vmatpush1.bf16.msra.mxu0 0
        %395 = vmatprep.subr.bf16.mxu0 0
        %396 = vmatpush1.bf16.msra.mxu0 0
        %397 = vmatprep.mubr.bf16.mxu0 0
        %398 = vmatmul.mubr.bf16.gmra.mrb[0].mxu0 %v363
        %v399 = vpop.f32.mrb[0].mxu0
        %v400 = vadd.f32 %v347, %v399
        %v401 = vpop.f32.mrb[0].mxu0
        %v402 = vpop.f32.mrb[0].mxu0
        %v403 = vpop.f32.mrb[0].mxu0
        %404 = vdwg.mxu0
        %405 = vxpose.xlu0.b32.start [1/16] %v400, 128
        %406 = vxpose.xlu0.b32.cont [2/16] 0.0, 128
        %407 = vxpose.xlu0.b32.cont [3/16] 0.0, 128
        %408 = vxpose.xlu0.b32.cont [4/16] 0.0, 128
        %409 = vxpose.xlu0.b32.cont [5/16] 0.0, 128
        %410 = vxpose.xlu0.b32.cont [6/16] 0.0, 128
        %411 = vxpose.xlu0.b32.cont [7/16] 0.0, 128
        %412 = vxpose.xlu0.b32.cont [8/16] 0.0, 128
        %413 = vxpose.xlu0.b32.cont [9/16] 0.0, 128
        %414 = vxpose.xlu0.b32.cont [10/16] 0.0, 128
        %415 = vxpose.xlu0.b32.cont [11/16] 0.0, 128
        %416 = vxpose.xlu0.b32.cont [12/16] 0.0, 128
        %417 = vxpose.xlu0.b32.cont [13/16] 0.0, 128
        %418 = vxpose.xlu0.b32.cont [14/16] 0.0, 128
        %419 = vxpose.xlu0.b32.cont [15/16] 0.0, 128
        %420 = vxpose.xlu0.b32.end [16/16] 0.0, 128
        %v421 = vpop.trf.xlu0
        %v422 = vpop.trf.xlu0
        %v423 = vpop.trf.xlu0
        %v424 = vpop.trf.xlu0
        %v425 = vpop.trf.xlu0
        %v426 = vpop.trf.xlu0
        %v427 = vpop.trf.xlu0
        %v428 = vpop.trf.xlu0
        %v429 = vpop.trf.xlu0
        %v430 = vpop.trf.xlu0
        %v431 = vpop.trf.xlu0
        %v432 = vpop.trf.xlu0
        %v433 = vpop.trf.xlu0
        %v434 = vpop.trf.xlu0
        %v435 = vpop.trf.xlu0
        %v436 = vpop.trf.xlu0
        %v437 = vpack.c.bf16 %v421, %v421
        %vm438 = vcmask 60416
        %439 = vst.msk [vmem:[%s328] sm:$0xf] %vm438, %v437
        %v440 = vld [vmem:[#allocation8] sm:$0xf]
        %v441 = vld [vmem:[#allocation8 + $0x4] sm:$0xf]
        %v442 = vld [vmem:[#allocation8 + $0x8] sm:$0xf]
        %v443 = vld [vmem:[#allocation8 + $0xc] sm:$0xf]
        %v444 = vld [vmem:[#allocation10] sm:$0x1]
        %v446 = vlaneseq
        %v447 = vshrl.u32 %v446, 7
        %v448 = vsub.s32 0, %v447
        %v449 = vrot.slane %v444, %v448
        %v455 = vunpack.c.l.b16 %v440
        %v456 = vunpack.c.l.b16 %v441
        %v457 = vunpack.c.l.b16 %v442
        %v458 = vunpack.c.l.b16 %v443
        %v459 = vpack.c.b16 %v456, %v455
        %v460 = vpack.c.b16 %v458, %v457
        %463 = vmatprep.subr.bf16.mxu0 0
        %464 = vmatpush1.bf16.msra.mxu0 %v459
        %465 = vmatprep.subr.bf16.mxu0 0
        %466 = vmatpush1.bf16.msra.mxu0 %v460
        %467 = vmatprep.subr.bf16.mxu0 0
        %468 = vmatpush1.bf16.msra.mxu0 0
        %469 = vmatprep.subr.bf16.mxu0 0
        %470 = vmatpush1.bf16.msra.mxu0 0
        %471 = vmatprep.subr.bf16.mxu0 0
        %472 = vmatpush1.bf16.msra.mxu0 0
        %473 = vmatprep.subr.bf16.mxu0 0
        %474 = vmatpush1.bf16.msra.mxu0 0
        %475 = vmatprep.subr.bf16.mxu0 0
        %476 = vmatpush1.bf16.msra.mxu0 0
        %477 = vmatprep.subr.bf16.mxu0 0
        %478 = vmatpush1.bf16.msra.mxu0 0
        %479 = vmatprep.subr.bf16.mxu0 0
        %480 = vmatpush1.bf16.msra.mxu0 0
        %481 = vmatprep.subr.bf16.mxu0 0
        %482 = vmatpush1.bf16.msra.mxu0 0
        %483 = vmatprep.subr.bf16.mxu0 0
        %484 = vmatpush1.bf16.msra.mxu0 0
        %485 = vmatprep.subr.bf16.mxu0 0
        %486 = vmatpush1.bf16.msra.mxu0 0
        %487 = vmatprep.subr.bf16.mxu0 0
        %488 = vmatpush1.bf16.msra.mxu0 0
        %489 = vmatprep.subr.bf16.mxu0 0
        %490 = vmatpush1.bf16.msra.mxu0 0
        %491 = vmatprep.subr.bf16.mxu0 0
        %492 = vmatpush1.bf16.msra.mxu0 0
        %493 = vmatprep.subr.bf16.mxu0 0
        %494 = vmatpush1.bf16.msra.mxu0 0
        %495 = vmatprep.mubr.bf16.mxu0 0
        %496 = vmatmul.mubr.bf16.gmra.mrb[0].mxu0 %v363
        %v497 = vpop.f32.mrb[0].mxu0
        %v498 = vadd.f32 %v449, %v497
        %v499 = vpop.f32.mrb[0].mxu0
        %v500 = vpop.f32.mrb[0].mxu0
        %v501 = vpop.f32.mrb[0].mxu0
        %502 = vdwg.mxu0
        %v503 = vpack.c.bf16 %v498, %v498
        %504 = vst.msk [vmem:[%s335] sm:$0xf] %vm438, %v503
        %s505 = scalar_lea.vmem [#allocation5], 16
        %v506 = vld [vmem:[%s505] sm:$0xf]
        %v507 = vld [vmem:[%s505 + $0x4] sm:$0xf]
        %v508 = vld [vmem:[%s505 + $0x8] sm:$0xf]
        %v509 = vld [vmem:[%s505 + $0xc] sm:$0xf]
        %s510 = scalar_lea.vmem [#allocation7], 1
        %v511 = vld [vmem:[%s510] sm:$0x1]
        %v513 = vlaneseq
        %v514 = vshrl.u32 %v513, 7
        %v515 = vsub.s32 0, %v514
        %v516 = vrot.slane %v511, %v515
        %v522 = vunpack.c.l.b16 %v506
        %v523 = vunpack.c.l.b16 %v507
        %v524 = vunpack.c.l.b16 %v508
        %v525 = vunpack.c.l.b16 %v509
        %v526 = vpack.c.b16 %v523, %v522
        %v527 = vpack.c.b16 %v525, %v524
        %530 = vmatprep.subr.bf16.mxu0 0
        %531 = vmatpush1.bf16.msra.mxu0 %v526
        %532 = vmatprep.subr.bf16.mxu0 0
        %533 = vmatpush1.bf16.msra.mxu0 %v527
        %534 = vmatprep.subr.bf16.mxu0 0
        %535 = vmatpush1.bf16.msra.mxu0 0
        %536 = vmatprep.subr.bf16.mxu0 0
        %537 = vmatpush1.bf16.msra.mxu0 0
        %538 = vmatprep.subr.bf16.mxu0 0
        %539 = vmatpush1.bf16.msra.mxu0 0
        %540 = vmatprep.subr.bf16.mxu0 0
        %541 = vmatpush1.bf16.msra.mxu0 0
        %542 = vmatprep.subr.bf16.mxu0 0
        %543 = vmatpush1.bf16.msra.mxu0 0
        %544 = vmatprep.subr.bf16.mxu0 0
        %545 = vmatpush1.bf16.msra.mxu0 0
        %546 = vmatprep.subr.bf16.mxu0 0
        %547 = vmatpush1.bf16.msra.mxu0 0
        %548 = vmatprep.subr.bf16.mxu0 0
        %549 = vmatpush1.bf16.msra.mxu0 0
        %550 = vmatprep.subr.bf16.mxu0 0
        %551 = vmatpush1.bf16.msra.mxu0 0
        %552 = vmatprep.subr.bf16.mxu0 0
        %553 = vmatpush1.bf16.msra.mxu0 0
        %554 = vmatprep.subr.bf16.mxu0 0
        %555 = vmatpush1.bf16.msra.mxu0 0
        %556 = vmatprep.subr.bf16.mxu0 0
        %557 = vmatpush1.bf16.msra.mxu0 0
        %558 = vmatprep.subr.bf16.mxu0 0
        %559 = vmatpush1.bf16.msra.mxu0 0
        %560 = vmatprep.subr.bf16.mxu0 0
        %561 = vmatpush1.bf16.msra.mxu0 0
        %562 = vmatprep.mubr.bf16.mxu0 0
        %563 = vmatmul.mubr.bf16.gmra.mrb[0].mxu0 %v363
        %v564 = vpop.f32.mrb[0].mxu0
        %v565 = vadd.f32 %v516, %v564
        %v566 = vpop.f32.mrb[0].mxu0
        %v567 = vpop.f32.mrb[0].mxu0
        %v568 = vpop.f32.mrb[0].mxu0
        %569 = vdwg.mxu0
        %570 = vxpose.xlu0.b32.start [1/16] %v565, 128
        %571 = vxpose.xlu0.b32.cont [2/16] 0.0, 128
        %572 = vxpose.xlu0.b32.cont [3/16] 0.0, 128
        %573 = vxpose.xlu0.b32.cont [4/16] 0.0, 128
        %574 = vxpose.xlu0.b32.cont [5/16] 0.0, 128
        %575 = vxpose.xlu0.b32.cont [6/16] 0.0, 128
        %576 = vxpose.xlu0.b32.cont [7/16] 0.0, 128
        %577 = vxpose.xlu0.b32.cont [8/16] 0.0, 128
        %578 = vxpose.xlu0.b32.cont [9/16] 0.0, 128
        %579 = vxpose.xlu0.b32.cont [10/16] 0.0, 128
        %580 = vxpose.xlu0.b32.cont [11/16] 0.0, 128
        %581 = vxpose.xlu0.b32.cont [12/16] 0.0, 128
        %582 = vxpose.xlu0.b32.cont [13/16] 0.0, 128
        %583 = vxpose.xlu0.b32.cont [14/16] 0.0, 128
        %584 = vxpose.xlu0.b32.cont [15/16] 0.0, 128
        %585 = vxpose.xlu0.b32.end [16/16] 0.0, 128
        %v586 = vpop.trf.xlu0
        %v587 = vpop.trf.xlu0
        %v588 = vpop.trf.xlu0
        %v589 = vpop.trf.xlu0
        %v590 = vpop.trf.xlu0
        %v591 = vpop.trf.xlu0
        %v592 = vpop.trf.xlu0
        %v593 = vpop.trf.xlu0
        %v594 = vpop.trf.xlu0
        %v595 = vpop.trf.xlu0
        %v596 = vpop.trf.xlu0
        %v597 = vpop.trf.xlu0
        %v598 = vpop.trf.xlu0
        %v599 = vpop.trf.xlu0
        %v600 = vpop.trf.xlu0
        %v601 = vpop.trf.xlu0
        %v602 = vpack.c.bf16 %v586, %v586
        %s603 = scalar_lea.vmem %s328, 4 [#allocation11]
        %604 = vst.msk [vmem:[%s603] sm:$0xf] %vm438, %v602
        %s605 = scalar_lea.vmem [#allocation8], 16
        %v606 = vld [vmem:[%s605] sm:$0xf]
        %v607 = vld [vmem:[%s605 + $0x4] sm:$0xf]
        %v608 = vld [vmem:[%s605 + $0x8] sm:$0xf]
        %v609 = vld [vmem:[%s605 + $0xc] sm:$0xf]
        %s610 = scalar_lea.vmem [#allocation10], 1
        %v611 = vld [vmem:[%s610] sm:$0x1]
        %v613 = vlaneseq
        %v614 = vshrl.u32 %v613, 7
        %v615 = vsub.s32 0, %v614
        %v616 = vrot.slane %v611, %v615
        %v622 = vunpack.c.l.b16 %v606
        %v623 = vunpack.c.l.b16 %v607
        %v624 = vunpack.c.l.b16 %v608
        %v625 = vunpack.c.l.b16 %v609
        %v626 = vpack.c.b16 %v623, %v622
        %v627 = vpack.c.b16 %v625, %v624
        %630 = vmatprep.subr.bf16.mxu0 0
        %631 = vmatpush1.bf16.msra.mxu0 %v626
        %632 = vmatprep.subr.bf16.mxu0 0
        %633 = vmatpush1.bf16.msra.mxu0 %v627
        %634 = vmatprep.subr.bf16.mxu0 0
        %635 = vmatpush1.bf16.msra.mxu0 0
        %636 = vmatprep.subr.bf16.mxu0 0
        %637 = vmatpush1.bf16.msra.mxu0 0
        %638 = vmatprep.subr.bf16.mxu0 0
        %639 = vmatpush1.bf16.msra.mxu0 0
        %640 = vmatprep.subr.bf16.mxu0 0
        %641 = vmatpush1.bf16.msra.mxu0 0
        %642 = vmatprep.subr.bf16.mxu0 0
        %643 = vmatpush1.bf16.msra.mxu0 0
        %644 = vmatprep.subr.bf16.mxu0 0
        %645 = vmatpush1.bf16.msra.mxu0 0
        %646 = vmatprep.subr.bf16.mxu0 0
        %647 = vmatpush1.bf16.msra.mxu0 0
        %648 = vmatprep.subr.bf16.mxu0 0
        %649 = vmatpush1.bf16.msra.mxu0 0
        %650 = vmatprep.subr.bf16.mxu0 0
        %651 = vmatpush1.bf16.msra.mxu0 0
        %652 = vmatprep.subr.bf16.mxu0 0
        %653 = vmatpush1.bf16.msra.mxu0 0
        %654 = vmatprep.subr.bf16.mxu0 0
        %655 = vmatpush1.bf16.msra.mxu0 0
        %656 = vmatprep.subr.bf16.mxu0 0
        %657 = vmatpush1.bf16.msra.mxu0 0
        %658 = vmatprep.subr.bf16.mxu0 0
        %659 = vmatpush1.bf16.msra.mxu0 0
        %660 = vmatprep.subr.bf16.mxu0 0
        %661 = vmatpush1.bf16.msra.mxu0 0
        %662 = vmatprep.mubr.bf16.mxu0 0
        %663 = vmatmul.mubr.bf16.gmra.mrb[0].mxu0 %v363
        %v664 = vpop.f32.mrb[0].mxu0
        %v665 = vadd.f32 %v616, %v664
        %v666 = vpop.f32.mrb[0].mxu0
        %v667 = vpop.f32.mrb[0].mxu0
        %v668 = vpop.f32.mrb[0].mxu0
        %669 = vdwg.mxu0
        %v670 = vpack.c.bf16 %v665, %v665
        %s671 = scalar_lea.vmem %s335, 4 [#allocation12]
        %672 = vst.msk [vmem:[%s671] sm:$0xf] %vm438, %v670
        %s673 = scalar_lea.vmem [#allocation5], 32
        %v674 = vld [vmem:[%s673] sm:$0xf]
        %v675 = vld [vmem:[%s673 + $0x4] sm:$0xf]
        %v676 = vld [vmem:[%s673 + $0x8] sm:$0xf]
        %v677 = vld [vmem:[%s673 + $0xc] sm:$0xf]
        %s678 = scalar_lea.vmem [#allocation7], 2
        %v679 = vld [vmem:[%s678] sm:$0x1]
        %v681 = vlaneseq
        %v682 = vshrl.u32 %v681, 7
        %v683 = vsub.s32 0, %v682
        %v684 = vrot.slane %v679, %v683
        %v690 = vunpack.c.l.b16 %v674
        %v691 = vunpack.c.l.b16 %v675
        %v692 = vunpack.c.l.b16 %v676
        %v693 = vunpack.c.l.b16 %v677
        %v694 = vpack.c.b16 %v691, %v690
        %v695 = vpack.c.b16 %v693, %v692
        %698 = vmatprep.subr.bf16.mxu0 0
        %699 = vmatpush1.bf16.msra.mxu0 %v694
        %700 = vmatprep.subr.bf16.mxu0 0
        %701 = vmatpush1.bf16.msra.mxu0 %v695
        %702 = vmatprep.subr.bf16.mxu0 0
        %703 = vmatpush1.bf16.msra.mxu0 0
        %704 = vmatprep.subr.bf16.mxu0 0
        %705 = vmatpush1.bf16.msra.mxu0 0
        %706 = vmatprep.subr.bf16.mxu0 0
        %707 = vmatpush1.bf16.msra.mxu0 0
        %708 = vmatprep.subr.bf16.mxu0 0
        %709 = vmatpush1.bf16.msra.mxu0 0
        %710 = vmatprep.subr.bf16.mxu0 0
        %711 = vmatpush1.bf16.msra.mxu0 0
        %712 = vmatprep.subr.bf16.mxu0 0
        %713 = vmatpush1.bf16.msra.mxu0 0
        %714 = vmatprep.subr.bf16.mxu0 0
        %715 = vmatpush1.bf16.msra.mxu0 0
        %716 = vmatprep.subr.bf16.mxu0 0
        %717 = vmatpush1.bf16.msra.mxu0 0
        %718 = vmatprep.subr.bf16.mxu0 0
        %719 = vmatpush1.bf16.msra.mxu0 0
        %720 = vmatprep.subr.bf16.mxu0 0
        %721 = vmatpush1.bf16.msra.mxu0 0
        %722 = vmatprep.subr.bf16.mxu0 0
        %723 = vmatpush1.bf16.msra.mxu0 0
        %724 = vmatprep.subr.bf16.mxu0 0
        %725 = vmatpush1.bf16.msra.mxu0 0
        %726 = vmatprep.subr.bf16.mxu0 0
        %727 = vmatpush1.bf16.msra.mxu0 0
        %728 = vmatprep.subr.bf16.mxu0 0
        %729 = vmatpush1.bf16.msra.mxu0 0
        %730 = vmatprep.mubr.bf16.mxu0 0
        %731 = vmatmul.mubr.bf16.gmra.mrb[0].mxu0 %v363
        %v732 = vpop.f32.mrb[0].mxu0
        %v733 = vadd.f32 %v684, %v732
        %v734 = vpop.f32.mrb[0].mxu0
        %v735 = vpop.f32.mrb[0].mxu0
        %v736 = vpop.f32.mrb[0].mxu0
        %737 = vdwg.mxu0
        %738 = vxpose.xlu0.b32.start [1/16] %v733, 128
        %739 = vxpose.xlu0.b32.cont [2/16] 0.0, 128
        %740 = vxpose.xlu0.b32.cont [3/16] 0.0, 128
        %741 = vxpose.xlu0.b32.cont [4/16] 0.0, 128
        %742 = vxpose.xlu0.b32.cont [5/16] 0.0, 128
        %743 = vxpose.xlu0.b32.cont [6/16] 0.0, 128
        %744 = vxpose.xlu0.b32.cont [7/16] 0.0, 128
        %745 = vxpose.xlu0.b32.cont [8/16] 0.0, 128
        %746 = vxpose.xlu0.b32.cont [9/16] 0.0, 128
        %747 = vxpose.xlu0.b32.cont [10/16] 0.0, 128
        %748 = vxpose.xlu0.b32.cont [11/16] 0.0, 128
        %749 = vxpose.xlu0.b32.cont [12/16] 0.0, 128
        %750 = vxpose.xlu0.b32.cont [13/16] 0.0, 128
        %751 = vxpose.xlu0.b32.cont [14/16] 0.0, 128
        %752 = vxpose.xlu0.b32.cont [15/16] 0.0, 128
        %753 = vxpose.xlu0.b32.end [16/16] 0.0, 128
        %v754 = vpop.trf.xlu0
        %v755 = vpop.trf.xlu0
        %v756 = vpop.trf.xlu0
        %v757 = vpop.trf.xlu0
        %v758 = vpop.trf.xlu0
        %v759 = vpop.trf.xlu0
        %v760 = vpop.trf.xlu0
        %v761 = vpop.trf.xlu0
        %v762 = vpop.trf.xlu0
        %v763 = vpop.trf.xlu0
        %v764 = vpop.trf.xlu0
        %v765 = vpop.trf.xlu0
        %v766 = vpop.trf.xlu0
        %v767 = vpop.trf.xlu0
        %v768 = vpop.trf.xlu0
        %v769 = vpop.trf.xlu0
        %v770 = vpack.c.bf16 %v754, %v754
        %s771 = scalar_lea.vmem %s328, 8 [#allocation11]
        %772 = vst.msk [vmem:[%s771] sm:$0xf] %vm438, %v770
        %s773 = scalar_lea.vmem [#allocation8], 32
        %v774 = vld [vmem:[%s773] sm:$0xf]
        %v775 = vld [vmem:[%s773 + $0x4] sm:$0xf]
        %v776 = vld [vmem:[%s773 + $0x8] sm:$0xf]
        %v777 = vld [vmem:[%s773 + $0xc] sm:$0xf]
        %s778 = scalar_lea.vmem [#allocation10], 2
        %v779 = vld [vmem:[%s778] sm:$0x1]
        %v781 = vlaneseq
        %v782 = vshrl.u32 %v781, 7
        %v783 = vsub.s32 0, %v782
        %v784 = vrot.slane %v779, %v783
        %v790 = vunpack.c.l.b16 %v774
        %v791 = vunpack.c.l.b16 %v775
        %v792 = vunpack.c.l.b16 %v776
        %v793 = vunpack.c.l.b16 %v777
        %v794 = vpack.c.b16 %v791, %v790
        %v795 = vpack.c.b16 %v793, %v792
        %798 = vmatprep.subr.bf16.mxu0 0
        %799 = vmatpush1.bf16.msra.mxu0 %v794
        %800 = vmatprep.subr.bf16.mxu0 0
        %801 = vmatpush1.bf16.msra.mxu0 %v795
        %802 = vmatprep.subr.bf16.mxu0 0
        %803 = vmatpush1.bf16.msra.mxu0 0
        %804 = vmatprep.subr.bf16.mxu0 0
        %805 = vmatpush1.bf16.msra.mxu0 0
        %806 = vmatprep.subr.bf16.mxu0 0
        %807 = vmatpush1.bf16.msra.mxu0 0
        %808 = vmatprep.subr.bf16.mxu0 0
        %809 = vmatpush1.bf16.msra.mxu0 0
        %810 = vmatprep.subr.bf16.mxu0 0
        %811 = vmatpush1.bf16.msra.mxu0 0
        %812 = vmatprep.subr.bf16.mxu0 0
        %813 = vmatpush1.bf16.msra.mxu0 0
        %814 = vmatprep.subr.bf16.mxu0 0
        %815 = vmatpush1.bf16.msra.mxu0 0
        %816 = vmatprep.subr.bf16.mxu0 0
        %817 = vmatpush1.bf16.msra.mxu0 0
        %818 = vmatprep.subr.bf16.mxu0 0
        %819 = vmatpush1.bf16.msra.mxu0 0
        %820 = vmatprep.subr.bf16.mxu0 0
        %821 = vmatpush1.bf16.msra.mxu0 0
        %822 = vmatprep.subr.bf16.mxu0 0
        %823 = vmatpush1.bf16.msra.mxu0 0
        %824 = vmatprep.subr.bf16.mxu0 0
        %825 = vmatpush1.bf16.msra.mxu0 0
        %826 = vmatprep.subr.bf16.mxu0 0
        %827 = vmatpush1.bf16.msra.mxu0 0
        %828 = vmatprep.subr.bf16.mxu0 0
        %829 = vmatpush1.bf16.msra.mxu0 0
        %830 = vmatprep.mubr.bf16.mxu0 0
        %831 = vmatmul.mubr.bf16.gmra.mrb[0].mxu0 %v363
        %v832 = vpop.f32.mrb[0].mxu0
        %v833 = vadd.f32 %v784, %v832
        %v834 = vpop.f32.mrb[0].mxu0
        %v835 = vpop.f32.mrb[0].mxu0
        %v836 = vpop.f32.mrb[0].mxu0
        %837 = vdwg.mxu0
        %v838 = vpack.c.bf16 %v833, %v833
        %s839 = scalar_lea.vmem %s335, 8 [#allocation12]
        %840 = vst.msk [vmem:[%s839] sm:$0xf] %vm438, %v838
        %s841 = scalar_lea.vmem [#allocation5], 48
        %v842 = vld [vmem:[%s841] sm:$0xf]
        %v843 = vld [vmem:[%s841 + $0x4] sm:$0xf]
        %v844 = vld [vmem:[%s841 + $0x8] sm:$0xf]
        %v845 = vld [vmem:[%s841 + $0xc] sm:$0xf]
        %s846 = scalar_lea.vmem [#allocation7], 3
        %v847 = vld [vmem:[%s846] sm:$0x1]
        %v849 = vlaneseq
        %v850 = vshrl.u32 %v849, 7
        %v851 = vsub.s32 0, %v850
        %v852 = vrot.slane %v847, %v851
        %v858 = vunpack.c.l.b16 %v842
        %v859 = vunpack.c.l.b16 %v843
        %v860 = vunpack.c.l.b16 %v844
        %v861 = vunpack.c.l.b16 %v845
        %v862 = vpack.c.b16 %v859, %v858
        %v863 = vpack.c.b16 %v861, %v860
        %866 = vmatprep.subr.bf16.mxu0 0
        %867 = vmatpush1.bf16.msra.mxu0 %v862
        %868 = vmatprep.subr.bf16.mxu0 0
        %869 = vmatpush1.bf16.msra.mxu0 %v863
        %870 = vmatprep.subr.bf16.mxu0 0
        %871 = vmatpush1.bf16.msra.mxu0 0
        %872 = vmatprep.subr.bf16.mxu0 0
        %873 = vmatpush1.bf16.msra.mxu0 0
        %874 = vmatprep.subr.bf16.mxu0 0
        %875 = vmatpush1.bf16.msra.mxu0 0
        %876 = vmatprep.subr.bf16.mxu0 0
        %877 = vmatpush1.bf16.msra.mxu0 0
        %878 = vmatprep.subr.bf16.mxu0 0
        %879 = vmatpush1.bf16.msra.mxu0 0
        %880 = vmatprep.subr.bf16.mxu0 0
        %881 = vmatpush1.bf16.msra.mxu0 0
        %882 = vmatprep.subr.bf16.mxu0 0
        %883 = vmatpush1.bf16.msra.mxu0 0
        %884 = vmatprep.subr.bf16.mxu0 0
        %885 = vmatpush1.bf16.msra.mxu0 0
        %886 = vmatprep.subr.bf16.mxu0 0
        %887 = vmatpush1.bf16.msra.mxu0 0
        %888 = vmatprep.subr.bf16.mxu0 0
        %889 = vmatpush1.bf16.msra.mxu0 0
        %890 = vmatprep.subr.bf16.mxu0 0
        %891 = vmatpush1.bf16.msra.mxu0 0
        %892 = vmatprep.subr.bf16.mxu0 0
        %893 = vmatpush1.bf16.msra.mxu0 0
        %894 = vmatprep.subr.bf16.mxu0 0
        %895 = vmatpush1.bf16.msra.mxu0 0
        %896 = vmatprep.subr.bf16.mxu0 0
        %897 = vmatpush1.bf16.msra.mxu0 0
        %898 = vmatprep.mubr.bf16.mxu0 0
        %899 = vmatmul.mubr.bf16.gmra.mrb[0].mxu0 %v363
        %v900 = vpop.f32.mrb[0].mxu0
        %v901 = vadd.f32 %v852, %v900
        %v902 = vpop.f32.mrb[0].mxu0
        %v903 = vpop.f32.mrb[0].mxu0
        %v904 = vpop.f32.mrb[0].mxu0
        %905 = vdwg.mxu0
        %906 = vxpose.xlu0.b32.start [1/16] %v901, 128
        %907 = vxpose.xlu0.b32.cont [2/16] 0.0, 128
        %908 = vxpose.xlu0.b32.cont [3/16] 0.0, 128
        %909 = vxpose.xlu0.b32.cont [4/16] 0.0, 128
        %910 = vxpose.xlu0.b32.cont [5/16] 0.0, 128
        %911 = vxpose.xlu0.b32.cont [6/16] 0.0, 128
        %912 = vxpose.xlu0.b32.cont [7/16] 0.0, 128
        %913 = vxpose.xlu0.b32.cont [8/16] 0.0, 128
        %914 = vxpose.xlu0.b32.cont [9/16] 0.0, 128
        %915 = vxpose.xlu0.b32.cont [10/16] 0.0, 128
        %916 = vxpose.xlu0.b32.cont [11/16] 0.0, 128
        %917 = vxpose.xlu0.b32.cont [12/16] 0.0, 128
        %918 = vxpose.xlu0.b32.cont [13/16] 0.0, 128
        %919 = vxpose.xlu0.b32.cont [14/16] 0.0, 128
        %920 = vxpose.xlu0.b32.cont [15/16] 0.0, 128
        %921 = vxpose.xlu0.b32.end [16/16] 0.0, 128
        %v922 = vpop.trf.xlu0
        %v923 = vpop.trf.xlu0
        %v924 = vpop.trf.xlu0
        %v925 = vpop.trf.xlu0
        %v926 = vpop.trf.xlu0
        %v927 = vpop.trf.xlu0
        %v928 = vpop.trf.xlu0
        %v929 = vpop.trf.xlu0
        %v930 = vpop.trf.xlu0
        %v931 = vpop.trf.xlu0
        %v932 = vpop.trf.xlu0
        %v933 = vpop.trf.xlu0
        %v934 = vpop.trf.xlu0
        %v935 = vpop.trf.xlu0
        %v936 = vpop.trf.xlu0
        %v937 = vpop.trf.xlu0
        %v938 = vpack.c.bf16 %v922, %v922
        %s939 = scalar_lea.vmem %s328, 12 [#allocation11]
        %940 = vst.msk [vmem:[%s939] sm:$0xf] %vm438, %v938
        %s941 = scalar_lea.vmem [#allocation8], 48
        %v942 = vld [vmem:[%s941] sm:$0xf]
        %v943 = vld [vmem:[%s941 + $0x4] sm:$0xf]
        %v944 = vld [vmem:[%s941 + $0x8] sm:$0xf]
        %v945 = vld [vmem:[%s941 + $0xc] sm:$0xf]
        %s946 = scalar_lea.vmem [#allocation10], 3
        %v947 = vld [vmem:[%s946] sm:$0x1]
        %v949 = vlaneseq
        %v950 = vshrl.u32 %v949, 7
        %v951 = vsub.s32 0, %v950
        %v952 = vrot.slane %v947, %v951
        %v958 = vunpack.c.l.b16 %v942
        %v959 = vunpack.c.l.b16 %v943
        %v960 = vunpack.c.l.b16 %v944
        %v961 = vunpack.c.l.b16 %v945
        %v962 = vpack.c.b16 %v959, %v958
        %v963 = vpack.c.b16 %v961, %v960
        %966 = vmatprep.subr.bf16.mxu0 0
        %967 = vmatpush1.bf16.msra.mxu0 %v962
        %968 = vmatprep.subr.bf16.mxu0 0
        %969 = vmatpush1.bf16.msra.mxu0 %v963
        %970 = vmatprep.subr.bf16.mxu0 0
        %971 = vmatpush1.bf16.msra.mxu0 0
        %972 = vmatprep.subr.bf16.mxu0 0
        %973 = vmatpush1.bf16.msra.mxu0 0
        %974 = vmatprep.subr.bf16.mxu0 0
        %975 = vmatpush1.bf16.msra.mxu0 0
        %976 = vmatprep.subr.bf16.mxu0 0
        %977 = vmatpush1.bf16.msra.mxu0 0
        %978 = vmatprep.subr.bf16.mxu0 0
        %979 = vmatpush1.bf16.msra.mxu0 0
        %980 = vmatprep.subr.bf16.mxu0 0
        %981 = vmatpush1.bf16.msra.mxu0 0
        %982 = vmatprep.subr.bf16.mxu0 0
        %983 = vmatpush1.bf16.msra.mxu0 0
        %984 = vmatprep.subr.bf16.mxu0 0
        %985 = vmatpush1.bf16.msra.mxu0 0
        %986 = vmatprep.subr.bf16.mxu0 0
        %987 = vmatpush1.bf16.msra.mxu0 0
        %988 = vmatprep.subr.bf16.mxu0 0
        %989 = vmatpush1.bf16.msra.mxu0 0
        %990 = vmatprep.subr.bf16.mxu0 0
        %991 = vmatpush1.bf16.msra.mxu0 0
        %992 = vmatprep.subr.bf16.mxu0 0
        %993 = vmatpush1.bf16.msra.mxu0 0
        %994 = vmatprep.subr.bf16.mxu0 0
        %995 = vmatpush1.bf16.msra.mxu0 0
        %996 = vmatprep.subr.bf16.mxu0 0
        %997 = vmatpush1.bf16.msra.mxu0 0
        %998 = vmatprep.mubr.bf16.mxu0 0
        %999 = vmatmul.mubr.bf16.gmra.mrb[0].mxu0 %v363
        %v1000 = vpop.f32.mrb[0].mxu0
        %v1001 = vadd.f32 %v952, %v1000
        %v1002 = vpop.f32.mrb[0].mxu0
        %v1003 = vpop.f32.mrb[0].mxu0
        %v1004 = vpop.f32.mrb[0].mxu0
        %1005 = vdwg.mxu0
        %v1006 = vpack.c.bf16 %v1001, %v1001
        %s1007 = scalar_lea.vmem %s335, 12 [#allocation12]
        %1008 = vst.msk [vmem:[%s1007] sm:$0xf] %vm438, %v1006
        %s1009 = sand.u32 %s147, 1
        %s1010 = scalar_lea.sflag [#allocation4], %s1009
        %s1011 = sand.u32 %s147, 1
        %s1012 = smul.addr %s1011, 16
        %s1013 = scalar_lea.vmem [#allocation11], %s1012
        %s1014 = sand.u32 %s173, 1
        %s1015 = scalar_lea.sflag [#allocation13], %s1014
        %s1016 = sand.u32 %s173, 1
        %s1017 = smul.addr %s1016, 16
        %s1018 = scalar_lea.vmem [#allocation12], %s1017
        // Predicated region
        $region61: #{tpu_custom_call.1} parent=39 // pred_check
          %p1019 = pneg %p157
        $region62: #{tpu_custom_call.1} parent=39 // pred_check_branch
          %1021 = sbr.rel (%p1019) target = $region64
        $region63: #{tpu_custom_call.1} parent=39 // pred_region
          %s1023 = ssub.s32 256, 256
          %1024 = vsyncadd %s1010, %s1023
          %s1025 = smul.addr %s29, 4
          %s1026 = smul.addr %s1025, 64
          %s1027 = scalar_lea.hbm %s5, %s1026
          %s1028 = sshll.u32 %s1013, 4
          %s1029 = int_to_ptr.vmem [resolvable:$true] %s1028
          %1034 = dma.vmem_to_hbm [thread:$0]  %s1029, 256, %s1027, %s1010, 64, 64, 4
        $region64: #{tpu_custom_call.1} parent=39 // pred_fallthru
          _
        // Predicated region
        $region65: #{tpu_custom_call.1} parent=39 // pred_check
          %p1035 = pneg %p183
        $region66: #{tpu_custom_call.1} parent=39 // pred_check_branch
          %1037 = sbr.rel (%p1035) target = $region68
        $region67: #{tpu_custom_call.1} parent=39 // pred_region
          %s1039 = ssub.s32 256, 256
          %1040 = vsyncadd %s1015, %s1039
          %s1041 = smul.addr %s29, 4
          %s1042 = smul.addr %s1041, 64
          %s1043 = scalar_lea.hbm %s6, %s1042
          %s1044 = sshll.u32 %s1018, 4
          %s1045 = int_to_ptr.vmem [resolvable:$true] %s1044
          %1050 = dma.vmem_to_hbm [thread:$0]  %s1045, 256, %s1043, %s1015, 64, 64, 4
        $region68: #{tpu_custom_call.1} parent=39 // pred_fallthru
          _
      $region40: #{tpu_custom_call.1} parent=5 // pred_fallthru
        _
      %p1051 = scmp.le.s32.totalorder 2, %s24
      // Predicated region
      $region69: #{tpu_custom_call.1} parent=5 // pred_check
        %p1052 = pneg %p1051
      $region70: #{tpu_custom_call.1} parent=5 // pred_check_branch
        %1054 = sbr.rel (%p1052) target = $region72
      $region71: #{tpu_custom_call.1} parent=5 // pred_region
        %s1055 = ssub.s32 %s24, 2
        // Predicated region
        $region73: #{tpu_custom_call.1} parent=71 // pred_check
          %p1056 = pneg %p163
        $region74: #{tpu_custom_call.1} parent=71 // pred_check_branch
          %1058 = sbr.rel (%p1056) target = $region76
        $region75: #{tpu_custom_call.1} parent=71 // pred_region
          %s1059 = sand.u32 %s148, 1
          %s1060 = scalar_lea.sflag [#allocation4], %s1059
          %s1061 = sand.u32 %s148, 1
          %s1062 = smul.addr %s1061, 16
          %s1063 = scalar_lea.vmem [#allocation11], %s1062
          %1064 = dma.done %s1060, 256
        $region76: #{tpu_custom_call.1} parent=71 // pred_fallthru
          _
        // Predicated region
        $region77: #{tpu_custom_call.1} parent=71 // pred_check
          %p1065 = pneg %p189
        $region78: #{tpu_custom_call.1} parent=71 // pred_check_branch
          %1067 = sbr.rel (%p1065) target = $region80
        $region79: #{tpu_custom_call.1} parent=71 // pred_region
          %s1068 = sand.u32 %s174, 1
          %s1069 = scalar_lea.sflag [#allocation13], %s1068
          %s1070 = sand.u32 %s174, 1
          %s1071 = smul.addr %s1070, 16
          %s1072 = scalar_lea.vmem [#allocation12], %s1071
          %1073 = dma.done %s1069, 256
        $region80: #{tpu_custom_call.1} parent=71 // pred_fallthru
          _
      $region72: #{tpu_custom_call.1} parent=5 // pred_fallthru
        _
    $region6: #{tpu_custom_call.1} parent=1 // loop_footer
      %s28 = sadd.s32 1, %s24
    $region7: #{tpu_custom_call.1} parent=1 // loop_footer_branch
      %23 = sbr.rel target = $region3
    $region8: #{tpu_custom_call.1} parent=1 // loop_exit
      _
    %1074 = vsyncpa [#allocation3], 1
    %s1075 = scalar_lea.sflag [#allocation3], 1
    %1076 = vsyncpa %s1075, 1
    %1077 = vsyncpa [#allocation6], 1
    %1078 = vsyncpa [#allocation9], 1
    %1079 = vsyncpa [#allocation4], 1
    %s1080 = scalar_lea.sflag [#allocation4], 1
    %1081 = vsyncpa %s1080, 1
    %1082 = vsyncpa [#allocation13], 1
    %s1083 = scalar_lea.sflag [#allocation13], 1
    %1084 = vsyncpa %s1083, 1

</llo_original>
